<compile_context>
chip_gen: v7x
topology: tpu7x:2x2x1
jax: 0.10.0
libtpu: 0.0.40
codegen_flags: <defaults>
</compile_context>

<pallas_src>
import jax
import jax.numpy as jnp
from jax.experimental import pallas as pl
from jax.experimental.pallas import tpu as pltpu


def _rotary_kernel(x_ref, cos_ref, sin_ref, o_ref):
    """x_ref/o_ref: (1, Tt, H, D); cos_ref/sin_ref: (Tt, 1, D)."""
    x = x_ref[0].astype(jnp.float32)            # (Tt, H, D)
    half = x.shape[-1] // 2
    c = cos_ref[...]                            # (Tt, 1, D): broadcasts over heads
    s = sin_ref[...]                            # (sublane splat; cheap)
    # Partner element for the rotation: lanes become [x2, x1] (XLU lane roll).
    partner = pltpu.roll(x, shift=half, axis=2)
    o_ref[0] = (x * c + partner * s).astype(o_ref.dtype)


def rotary(x, *, n_embd, base=10000.0, t_tile=None):
    """Pallas Rotary forward.  x: (B, T, n_heads, head_dim), head_dim == n_embd."""
    B, T, H, D = x.shape
    assert D % 2 == 0, "head_dim must be even"
    assert D == n_embd, (
        "Rotary builds inv_freq from n_embd; the reference module's broadcast "
        "requires head_dim == n_embd")
    if t_tile is None:
        t_tile = min(T, 256)

    # cos/sin tables (the module's seq_len cache becomes trace-time table
    # construction).  Full-width signed tables so the kernel needs no
    # slice/concat:  y = x*[cos,cos] + roll(x, D/2)*[sin,-sin].
    inv_freq = (1.0 / base) ** (
        jnp.arange(0, n_embd, 2, dtype=jnp.float32) / n_embd)
    t = jnp.arange(T, dtype=jnp.float32)
    freqs = jnp.outer(t, inv_freq)                                   # (T, D//2)
    cos = jnp.cos(freqs)
    sin = jnp.sin(freqs)
    cos_full = jnp.concatenate([cos, cos], axis=-1).reshape(T, 1, D)
    sin_signed = jnp.concatenate([sin, -sin], axis=-1).reshape(T, 1, D)

    grid = (B, pl.cdiv(T, t_tile))
    out = pl.pallas_call(
        _rotary_kernel,
        out_shape=jax.ShapeDtypeStruct((B, T, H, D), x.dtype),
        grid_spec=pltpu.PrefetchScalarGridSpec(
            num_scalar_prefetch=0,
            grid=grid,
            in_specs=[
                pl.BlockSpec((1, t_tile, H, D), lambda b, ti: (b, ti, 0, 0)),
                pl.BlockSpec((t_tile, 1, D), lambda b, ti: (ti, 0, 0)),
                pl.BlockSpec((t_tile, 1, D), lambda b, ti: (ti, 0, 0)),
            ],
            out_specs=pl.BlockSpec((1, t_tile, H, D),
                                   lambda b, ti: (b, ti, 0, 0)),
        ),
        compiler_params=pltpu.CompilerParams(
            dimension_semantics=("parallel", "parallel")),
    )(x, cos_full, sin_signed)
    return out


def rotary_reference(x, *, n_embd, base=10000.0):
    """Pure-JAX mirror of the PyTorch Rotary.forward."""
    B, T, H, D = x.shape
    inv_freq = (1.0 / base) ** (
        jnp.arange(0, n_embd, 2, dtype=jnp.float32) / n_embd)
    freqs = jnp.outer(jnp.arange(T, dtype=jnp.float32), inv_freq)
    cos = jnp.cos(freqs)[None, :, None, :]
    sin = jnp.sin(freqs)[None, :, None, :]
    x1, x2 = x[..., : D // 2], x[..., D // 2:]
    y1 = x1 * cos + x2 * sin
    y2 = -x1 * sin + x2 * cos
    return jnp.concatenate([y1, y2], axis=3).astype(x.dtype)


if __name__ == "__main__":
    # head_dim == n_embd (required by the module's broadcast).  D=128 is
    # lane-dense, H=8 is sublane-dense, so every vreg is fully used.
    B, T, H, n_embd = 2, 128, 8, 128
    key = jax.random.PRNGKey(0)
    x = jax.random.normal(key, (B, T, H, n_embd), dtype=jnp.float32)

    out = rotary(x, n_embd=n_embd)
    out = jax.block_until_ready(out)

    ref = rotary_reference(x, n_embd=n_embd)
    if out.shape != ref.shape or not jnp.allclose(out, ref, atol=1e-5, rtol=1e-5):
        raise AssertionError("Pallas Rotary kernel does not match JAX reference")

    print("KERNEL_OK")
</pallas_src>

<mosaic_0001>
module attributes {stable_mosaic.version = 11 : i64} {
  func.func @_rotary_kernel(%arg0: i32, %arg1: i32, %arg2: memref<1x128x8x128xf32, #tpu.memory_space<vmem>>, %arg3: memref<128x1x128xf32, #tpu.memory_space<vmem>>, %arg4: memref<128x1x128xf32, #tpu.memory_space<vmem>>, %arg5: memref<1x128x8x128xf32, #tpu.memory_space<vmem>>) attributes {dimension_semantics = [#tpu.dimension_semantics<parallel>, #tpu.dimension_semantics<parallel>], iteration_bounds = array<i64: 2, 1>, scalar_prefetch = 0 : i64, scratch_operands = 0 : i64, tpu.core_type = #tpu.core_type<tc>, window_params = [{transform_indices = @transform_0, window_bounds = array<i64: 1, 128, 8, 128>}, {transform_indices = @transform_1, window_bounds = array<i64: 128, 1, 128>}, {transform_indices = @transform_2, window_bounds = array<i64: 128, 1, 128>}, {transform_indices = @transform_3, window_bounds = array<i64: 1, 128, 8, 128>}]} {
    %c0 = arith.constant 0 : index
    %c0_0 = arith.constant 0 : index
    %c0_1 = arith.constant 0 : index
    %c0_2 = arith.constant 0 : index
    %0 = vector.load %arg2[%c0, %c0_0, %c0_1, %c0_2] : memref<1x128x8x128xf32, #tpu.memory_space<vmem>>, vector<1x128x8x128xf32>
    %1 = vector.shape_cast %0 : vector<1x128x8x128xf32> to vector<128x8x128xf32>
    %c0_3 = arith.constant 0 : index
    %c0_4 = arith.constant 0 : index
    %c0_5 = arith.constant 0 : index
    %2 = vector.load %arg3[%c0_3, %c0_4, %c0_5] : memref<128x1x128xf32, #tpu.memory_space<vmem>>, vector<128x1x128xf32>
    %c0_6 = arith.constant 0 : index
    %c0_7 = arith.constant 0 : index
    %c0_8 = arith.constant 0 : index
    %3 = vector.load %arg4[%c0_6, %c0_7, %c0_8] : memref<128x1x128xf32, #tpu.memory_space<vmem>>, vector<128x1x128xf32>
    %c64_i32 = arith.constant 64 : i32
    %4 = tpu.dynamic_rotate %1 by %c64_i32 dim 2 : vector<128x8x128xf32>, i32 -> vector<128x8x128xf32>
    %5 = vector.broadcast %2 : vector<128x1x128xf32> to vector<128x8x128xf32>
    %6 = arith.mulf %1, %5 : vector<128x8x128xf32>
    %7 = vector.broadcast %3 : vector<128x1x128xf32> to vector<128x8x128xf32>
    %8 = arith.mulf %4, %7 : vector<128x8x128xf32>
    %9 = arith.addf %6, %8 : vector<128x8x128xf32>
    %c0_9 = arith.constant 0 : index
    %c0_10 = arith.constant 0 : index
    %c0_11 = arith.constant 0 : index
    %c0_12 = arith.constant 0 : index
    %10 = vector.load %arg5[%c0_9, %c0_10, %c0_11, %c0_12] : memref<1x128x8x128xf32, #tpu.memory_space<vmem>>, vector<1x128x8x128xf32>
    %11 = vector.shape_cast %10 : vector<1x128x8x128xf32> to vector<128x8x128xf32>
    %12 = vector.shape_cast %9 : vector<128x8x128xf32> to vector<1x128x8x128xf32>
    tpu.vector_store %arg5[%c0_9, %c0_10, %c0_11, %c0_12], %12 {strides = array<i32>} : memref<1x128x8x128xf32, #tpu.memory_space<vmem>>, vector<1x128x8x128xf32>,
    return
  }
  func.func @transform_0(%arg0: i32, %arg1: i32) -> (i32, i32, i32, i32) {
    %c0_i32 = arith.constant 0 : i32
    %c0_i32_0 = arith.constant 0 : i32
    %c0_i32_1 = arith.constant 0 : i32
    return %arg0, %arg1, %c0_i32, %c0_i32_0 : i32, i32, i32, i32
  }
  func.func @transform_1(%arg0: i32, %arg1: i32) -> (i32, i32, i32) {
    %c0_i32 = arith.constant 0 : i32
    %c0_i32_0 = arith.constant 0 : i32
    %c0_i32_1 = arith.constant 0 : i32
    return %arg1, %c0_i32, %c0_i32_0 : i32, i32, i32
  }
  func.func @transform_2(%arg0: i32, %arg1: i32) -> (i32, i32, i32) {
    %c0_i32 = arith.constant 0 : i32
    %c0_i32_0 = arith.constant 0 : i32
    %c0_i32_1 = arith.constant 0 : i32
    return %arg1, %c0_i32, %c0_i32_0 : i32, i32, i32
  }
  func.func @transform_3(%arg0: i32, %arg1: i32) -> (i32, i32, i32, i32) {
    %c0_i32 = arith.constant 0 : i32
    %c0_i32_0 = arith.constant 0 : i32
    %c0_i32_1 = arith.constant 0 : i32
    return %arg0, %arg1, %c0_i32, %c0_i32_0 : i32, i32, i32, i32
  }
}

</mosaic_0001>

<llo_original>
// kernel: tpu_custom_call.1
$region0: #{tpu_custom_call.1}
  #allocation0 [shape = 'u32[]', space=smem, size = 0x4, offset = 0x4, fixed_abs, tag = 'smem constant byte address 0x4 - core index']
  #allocation1 [shape = 'u32[144,128]{1,0:T(1,128)}', space=vmem, size = 0x12000, scoped, tag = 'internal scratch']
  %s0 = inlined_call_operand.hbm [shape: f32[2,128,8,128], index: 0, kind: input, shape index: {}]
  %s1 = inlined_call_operand.hbm [shape: f32[128,1,128], index: 1, kind: input, shape index: {}]
  %s2 = inlined_call_operand.hbm [shape: f32[128,1,128], index: 2, kind: input, shape index: {}]
  %s3 = inlined_call_operand.hbm [shape: f32[2,128,8,128], index: 3, kind: output, shape index: {}]
  %s4 = sld [smem:[#allocation0]]
  $region57: #{tpu_custom_call.1} parent=0
    _
  %s6 = ssub.s32 1, %s4
  %s7 = scalar_select 0, %s6, %s4
  $region1: #{tpu_custom_call.1} parent=0
    #allocation2 [shape = 'u8[1048576]{0}', space=vmem, size = 0x100000, scoped, tag = 'input window, operand 0']
    #allocation3 [shape = 's32[2]{0}', space=sflag, size = 0x8, scoped, tag = 'scoped memory for tpu_custom_call.1']
    #allocation4 [shape = 's32[2]{0}', space=sflag, size = 0x8, scoped, tag = 'scoped memory for tpu_custom_call.1']
    #allocation5 [shape = 'u8[65536]{0}', space=vmem, size = 0x10000, scoped, tag = 'input window, operand 1, single buffered']
    #allocation6 [shape = 's32[1]{0}', space=sflag, size = 0x4, scoped, tag = 'scoped memory for tpu_custom_call.1']
    #allocation7 [shape = 'u8[65536]{0}', space=vmem, size = 0x10000, scoped, tag = 'input window, operand 2, single buffered']
    #allocation8 [shape = 'u8[1048576]{0}', space=vmem, size = 0x100000, scoped, tag = 'output window, operand 0']
    %8 = vsyncpa [#allocation3], 0
    %s9 = scalar_lea.sflag [#allocation3], 1
    %10 = vsyncpa %s9, 0
    %11 = vsyncpa [#allocation6], 0
    %12 = vsyncpa [#allocation4], 0
    %s13 = scalar_lea.sflag [#allocation4], 1
    %14 = vsyncpa %s13, 0
    loop: start=0, step=1, limit=4
    $region2: #{tpu_custom_call.1} parent=1 // loop_pre_header
      _
    $region3: #{tpu_custom_call.1} parent=1 // loop_header
      %s16 = sphi 0, %s20
      %p17 = scmp.ge.s32.totalorder %s16, 4
      %s23 = sphi 0, %s35
      %s24 = sphi 0, %s31
      %s25 = sphi 0, %s23
      %s26 = sphi 0, %s24
      %s27 = sphi 0, %s25
      %s28 = sphi 0, %s26
      %s40 = sphi 0, %s42
      %s43 = sphi 0, %s40
      %s44 = sphi 0, %s43
      %s60 = sphi 0, %s44
      %s66 = sphi 0, %s68
      %s69 = sphi 0, %s66
      %s70 = sphi 0, %s69
      %s86 = sphi 0, %s70
      %s92 = sphi 0, %s94
      %s95 = sphi 0, %s92
      %s96 = sphi 0, %s95
      %s112 = sphi 0, %s96
      %s120 = sphi 0, %s122
      %s123 = sphi 0, %s120
      %s124 = sphi 0, %s123
      %s140 = sphi 0, %s124
    $region4: #{tpu_custom_call.1} parent=1 // loop_header_branch
      %19 = sbr.rel (%p17) target = $region8
    $region5: #{tpu_custom_call.1} parent=1 // loop_body
      %s21 = ssub.s32 %s16, 1
      %s22 = ssub.s32 %s16, 2
      %s29 = sadd.s32 1, %s24
      %p30 = scmp.ge.s32.totalorder %s29, 1
      %s31 = scalar_select %p30, 0, %s29
      %s32 = sadd.s32 1, %s23
      %s33 = scalar_select %p30, %s32, %s23
      %p34 = scmp.ge.s32.totalorder %s33, 2
      %s35 = scalar_select %p34, 0, %s33
      %s36 = ssub.s32 %s23, %s35
      %s37 = ssub.s32 %s24, %s31
      %s38 = sor.u32 %s36, %s37
      %p39 = scmp.eq.s32.totalorder %s38, 0
      %s41 = sadd.s32 %s40, 1
      %s42 = scalar_select %p39, %s40, %s41
      %p45 = pneg %p39
      %p46 = scmp.eq.s32.totalorder %s16, 1
      %p47 = por %p45, %p46
      %p48 = scmp.ne.s32.totalorder %s40, %s43
      %p49 = scmp.eq.s32.totalorder %s16, 0
      %p50 = por %p48, %p49
      %p51 = scmp.ne.s32.totalorder %s40, %s43
      %p52 = scmp.eq.s32.totalorder %s21, 1
      %p53 = por %p51, %p52
      %p54 = scmp.ne.s32.totalorder %s43, %s44
      %p55 = scmp.eq.s32.totalorder %s21, 0
      %p56 = por %p54, %p55
      %p57 = scmp.ne.s32.totalorder %s43, %s44
      %p58 = scmp.eq.s32.totalorder %s22, 1
      %p59 = por %p57, %p58
      %p61 = scmp.ne.s32.totalorder %s44, %s60
      %p62 = scmp.eq.s32.totalorder %s22, 0
      %p63 = por %p61, %p62
      %s64 = ssub.s32 %s24, %s31
      %p65 = scmp.eq.s32.totalorder %s64, 0
      %s67 = sadd.s32 %s66, 1
      %s68 = scalar_select %p65, %s66, %s67
      %p71 = pneg %p65
      %p72 = scmp.eq.s32.totalorder %s16, 1
      %p73 = por %p71, %p72
      %p74 = scmp.ne.s32.totalorder %s66, %s69
      %p75 = scmp.eq.s32.totalorder %s16, 0
      %p76 = por %p74, %p75
      %p77 = scmp.ne.s32.totalorder %s66, %s69
      %p78 = scmp.eq.s32.totalorder %s21, 1
      %p79 = por %p77, %p78
      %p80 = scmp.ne.s32.totalorder %s69, %s70
      %p81 = scmp.eq.s32.totalorder %s21, 0
      %p82 = por %p80, %p81
      %p83 = scmp.ne.s32.totalorder %s69, %s70
      %p84 = scmp.eq.s32.totalorder %s22, 1
      %p85 = por %p83, %p84
      %p87 = scmp.ne.s32.totalorder %s70, %s86
      %p88 = scmp.eq.s32.totalorder %s22, 0
      %p89 = por %p87, %p88
      %s90 = ssub.s32 %s24, %s31
      %p91 = scmp.eq.s32.totalorder %s90, 0
      %s93 = sadd.s32 %s92, 1
      %s94 = scalar_select %p91, %s92, %s93
      %p97 = pneg %p91
      %p98 = scmp.eq.s32.totalorder %s16, 1
      %p99 = por %p97, %p98
      %p100 = scmp.ne.s32.totalorder %s92, %s95
      %p101 = scmp.eq.s32.totalorder %s16, 0
      %p102 = por %p100, %p101
      %p103 = scmp.ne.s32.totalorder %s92, %s95
      %p104 = scmp.eq.s32.totalorder %s21, 1
      %p105 = por %p103, %p104
      %p106 = scmp.ne.s32.totalorder %s95, %s96
      %p107 = scmp.eq.s32.totalorder %s21, 0
      %p108 = por %p106, %p107
      %p109 = scmp.ne.s32.totalorder %s95, %s96
      %p110 = scmp.eq.s32.totalorder %s22, 1
      %p111 = por %p109, %p110
      %p113 = scmp.ne.s32.totalorder %s96, %s112
      %p114 = scmp.eq.s32.totalorder %s22, 0
      %p115 = por %p113, %p114
      %s116 = ssub.s32 %s23, %s35
      %s117 = ssub.s32 %s24, %s31
      %s118 = sor.u32 %s116, %s117
      %p119 = scmp.eq.s32.totalorder %s118, 0
      %s121 = sadd.s32 %s120, 1
      %s122 = scalar_select %p119, %s120, %s121
      %p125 = pneg %p119
      %p126 = scmp.eq.s32.totalorder %s16, 1
      %p127 = por %p125, %p126
      %p128 = scmp.ne.s32.totalorder %s120, %s123
      %p129 = scmp.eq.s32.totalorder %s16, 0
      %p130 = por %p128, %p129
      %p131 = scmp.ne.s32.totalorder %s120, %s123
      %p132 = scmp.eq.s32.totalorder %s21, 1
      %p133 = por %p131, %p132
      %p134 = scmp.ne.s32.totalorder %s123, %s124
      %p135 = scmp.eq.s32.totalorder %s21, 0
      %p136 = por %p134, %p135
      %p137 = scmp.ne.s32.totalorder %s123, %s124
      %p138 = scmp.eq.s32.totalorder %s22, 1
      %p139 = por %p137, %p138
      %p141 = scmp.ne.s32.totalorder %s124, %s140
      %p142 = scmp.eq.s32.totalorder %s22, 0
      %p143 = por %p141, %p142
      %p144 = scmp.le.s32.totalorder 1, %s16
      %p145 = scmp.lt.s32.totalorder %s16, 3
      %p146 = pnand %p144, %p145
      %p147 = pneg %p146
      // Predicated region
      $region9: #{tpu_custom_call.1} parent=5 // pred_check
        _
      $region10: #{tpu_custom_call.1} parent=5 // pred_check_branch
        %149 = sbr.rel (%p146) target = $region12
      $region11: #{tpu_custom_call.1} parent=5 // pred_region
        %s150 = ssub.s32 %s16, 1
        // Predicated region
        $region13: #{tpu_custom_call.1} parent=11 // pred_check
          %p151 = pneg %p82
        $region14: #{tpu_custom_call.1} parent=11 // pred_check_branch
          %153 = sbr.rel (%p151) target = $region16
        $region15: #{tpu_custom_call.1} parent=11 // pred_region
          %s154 = smul.u32 128, %s26
          %s156 = ssub.s32 2048, 2048
          %157 = vsyncadd [#allocation6], %s156
          %s158 = smul.addr %s154, 16
          %s159 = scalar_lea.hbm %s1, %s158
          %s160 = sshll.u32 [#allocation5], 4
          %s161 = int_to_ptr.vmem [resolvable:$true] %s160
          %166 = dma.hbm_to_vmem [thread:$0]  %s159, 2048, %s161, [#allocation6], 16, 16, 1
        $region16: #{tpu_custom_call.1} parent=11 // pred_fallthru
          _
        // Predicated region
        $region17: #{tpu_custom_call.1} parent=11 // pred_check
          %p167 = pneg %p108
        $region18: #{tpu_custom_call.1} parent=11 // pred_check_branch
          %169 = sbr.rel (%p167) target = $region20
        $region19: #{tpu_custom_call.1} parent=11 // pred_region
          %s170 = smul.u32 128, %s26
          %s172 = ssub.s32 2048, 2048
          %173 = vsyncadd [#allocation6], %s172
          %s174 = smul.addr %s170, 16
          %s175 = scalar_lea.hbm %s2, %s174
          %s176 = sshll.u32 [#allocation7], 4
          %s177 = int_to_ptr.vmem [resolvable:$true] %s176
          %182 = dma.hbm_to_vmem [thread:$0]  %s175, 2048, %s177, [#allocation6], 16, 16, 1
        $region20: #{tpu_custom_call.1} parent=11 // pred_fallthru
          _
      $region12: #{tpu_custom_call.1} parent=5 // pred_fallthru
        _
      %p183 = scmp.lt.s32.totalorder %s16, 2
      // Predicated region
      $region21: #{tpu_custom_call.1} parent=5 // pred_check
        %p184 = pneg %p183
      $region22: #{tpu_custom_call.1} parent=5 // pred_check_branch
        %186 = sbr.rel (%p184) target = $region24
      $region23: #{tpu_custom_call.1} parent=5 // pred_region
        // Predicated region
        $region25: #{tpu_custom_call.1} parent=23 // pred_check
          %p187 = pneg %p50
        $region26: #{tpu_custom_call.1} parent=23 // pred_check_branch
          %189 = sbr.rel (%p187) target = $region28
        $region27: #{tpu_custom_call.1} parent=23 // pred_region
          %s190 = sand.u32 %s40, 1
          %s191 = scalar_lea.sflag [#allocation3], %s190
          %s192 = sand.u32 %s40, 1
          %s193 = smul.addr %s192, 1024
          %s194 = scalar_lea.vmem [#allocation2], %s193
          %s195 = smul.u32 128, %s24
          %s197 = ssub.s32 16384, 16384
          %198 = vsyncadd %s191, %s197
          %s199 = smul.addr %s23, 128
          %s200 = sadd.s32 %s195, %s199
          %s201 = smul.addr %s200, 128
          %s202 = scalar_lea.hbm %s0, %s201
          %s203 = sshll.u32 %s194, 4
          %s204 = int_to_ptr.vmem [resolvable:$true] %s203
          %209 = dma.hbm_to_vmem [thread:$0]  %s202, 16384, %s204, %s191, 128, 128, 8
        $region28: #{tpu_custom_call.1} parent=23 // pred_fallthru
          _
      $region24: #{tpu_custom_call.1} parent=5 // pred_fallthru
        _
      %p210 = scmp.le.s32.totalorder 1, %s16
      %p211 = scmp.lt.s32.totalorder %s16, 3
      %p212 = pnand %p210, %p211
      %p213 = pneg %p212
      // Predicated region
      $region29: #{tpu_custom_call.1} parent=5 // pred_check
        _
      $region30: #{tpu_custom_call.1} parent=5 // pred_check_branch
        %215 = sbr.rel (%p212) target = $region32
      $region31: #{tpu_custom_call.1} parent=5 // pred_region
        %s216 = ssub.s32 %s16, 1
        %s217 = sand.u32 %s43, 1
        %s218 = scalar_lea.sflag [#allocation3], %s217
        %s219 = sand.u32 %s43, 1
        %s220 = smul.addr %s219, 1024
        %s221 = scalar_lea.vmem [#allocation2], %s220
        // Predicated region
        $region33: #{tpu_custom_call.1} parent=31 // pred_check
          %p222 = pneg %p56
        $region34: #{tpu_custom_call.1} parent=31 // pred_check_branch
          %224 = sbr.rel (%p222) target = $region36
        $region35: #{tpu_custom_call.1} parent=31 // pred_region
          %225 = dma.done %s218, 16384
        $region36: #{tpu_custom_call.1} parent=31 // pred_fallthru
          _
        // Predicated region
        $region37: #{tpu_custom_call.1} parent=31 // pred_check
          %p226 = pneg %p82
        $region38: #{tpu_custom_call.1} parent=31 // pred_check_branch
          %228 = sbr.rel (%p226) target = $region40
        $region39: #{tpu_custom_call.1} parent=31 // pred_region
          %229 = dma.done [#allocation6], 2048
        $region40: #{tpu_custom_call.1} parent=31 // pred_fallthru
          _
        // Predicated region
        $region41: #{tpu_custom_call.1} parent=31 // pred_check
          %p230 = pneg %p108
        $region42: #{tpu_custom_call.1} parent=31 // pred_check_branch
          %232 = sbr.rel (%p230) target = $region44
        $region43: #{tpu_custom_call.1} parent=31 // pred_region
          %233 = dma.done [#allocation6], 2048
        $region44: #{tpu_custom_call.1} parent=31 // pred_fallthru
          _
        %s234 = sand.u32 %s43, 1
        %s235 = scalar_lea.sflag [#allocation3], %s234
        %s236 = sand.u32 %s43, 1
        %s237 = smul.addr %s236, 1024
        %s238 = scalar_lea.vmem [#allocation2], %s237
        %p239 = pneg %p56
        %p240 = pneg %p53
        %p241 = pneg %p82
        %p242 = pneg %p79
        %p243 = pneg %p108
        %p244 = pneg %p105
        %p245 = pneg %p136
        %p246 = pneg %p133
        %s247 = sand.u32 %s123, 1
        %s248 = scalar_lea.sflag [#allocation4], %s247
        %s249 = sand.u32 %s123, 1
        %s250 = smul.addr %s249, 1024
        %s251 = scalar_lea.vmem [#allocation8], %s250
        %s252 = smul.u32 128, %s26
        %s253 = smul.u32 128, %s26
        %s254 = smul.u32 128, %s26
        %s255 = smul.u32 128, %s26
        %v256 = vld [vmem:[%s221] sm:$0xff]
        %v257 = vld [vmem:[%s221 + $0x8] sm:$0xff]
        %v258 = vld [vmem:[%s221 + $0x10] sm:$0xff]
        %v259 = vld [vmem:[%s221 + $0x18] sm:$0xff]
        %v260 = vld [vmem:[%s221 + $0x20] sm:$0xff]
        %v261 = vld [vmem:[%s221 + $0x28] sm:$0xff]
        %v262 = vld [vmem:[%s221 + $0x30] sm:$0xff]
        %v263 = vld [vmem:[%s221 + $0x38] sm:$0xff]
        %v264 = vld [vmem:[%s221 + $0x40] sm:$0xff]
        %v265 = vld [vmem:[%s221 + $0x48] sm:$0xff]
        %v266 = vld [vmem:[%s221 + $0x50] sm:$0xff]
        %v267 = vld [vmem:[%s221 + $0x58] sm:$0xff]
        %v268 = vld [vmem:[%s221 + $0x60] sm:$0xff]
        %v269 = vld [vmem:[%s221 + $0x68] sm:$0xff]
        %v270 = vld [vmem:[%s221 + $0x70] sm:$0xff]
        %v271 = vld [vmem:[%s221 + $0x78] sm:$0xff]
        %v272 = vld [vmem:[%s221 + $0x80] sm:$0xff]
        %v273 = vld [vmem:[%s221 + $0x88] sm:$0xff]
        %v274 = vld [vmem:[%s221 + $0x90] sm:$0xff]
        %v275 = vld [vmem:[%s221 + $0x98] sm:$0xff]
        %v276 = vld [vmem:[%s221 + $0xa0] sm:$0xff]
        %v277 = vld [vmem:[%s221 + $0xa8] sm:$0xff]
        %v278 = vld [vmem:[%s221 + $0xb0] sm:$0xff]
        %v279 = vld [vmem:[%s221 + $0xb8] sm:$0xff]
        %v280 = vld [vmem:[%s221 + $0xc0] sm:$0xff]
        %v281 = vld [vmem:[%s221 + $0xc8] sm:$0xff]
        %v282 = vld [vmem:[%s221 + $0xd0] sm:$0xff]
        %v283 = vld [vmem:[%s221 + $0xd8] sm:$0xff]
        %v284 = vld [vmem:[%s221 + $0xe0] sm:$0xff]
        %v285 = vld [vmem:[%s221 + $0xe8] sm:$0xff]
        %v286 = vld [vmem:[%s221 + $0xf0] sm:$0xff]
        %v287 = vld [vmem:[%s221 + $0xf8] sm:$0xff]
        %v288 = vld [vmem:[%s221 + $0x100] sm:$0xff]
        %v289 = vld [vmem:[%s221 + $0x108] sm:$0xff]
        %v290 = vld [vmem:[%s221 + $0x110] sm:$0xff]
        %v291 = vld [vmem:[%s221 + $0x118] sm:$0xff]
        %v292 = vld [vmem:[%s221 + $0x120] sm:$0xff]
        %v293 = vld [vmem:[%s221 + $0x128] sm:$0xff]
        %v294 = vld [vmem:[%s221 + $0x130] sm:$0xff]
        %v295 = vld [vmem:[%s221 + $0x138] sm:$0xff]
        %v296 = vld [vmem:[%s221 + $0x140] sm:$0xff]
        %v297 = vld [vmem:[%s221 + $0x148] sm:$0xff]
        %v298 = vld [vmem:[%s221 + $0x150] sm:$0xff]
        %v299 = vld [vmem:[%s221 + $0x158] sm:$0xff]
        %v300 = vld [vmem:[%s221 + $0x160] sm:$0xff]
        %v301 = vld [vmem:[%s221 + $0x168] sm:$0xff]
        %v302 = vld [vmem:[%s221 + $0x170] sm:$0xff]
        %v303 = vld [vmem:[%s221 + $0x178] sm:$0xff]
        %v304 = vld [vmem:[%s221 + $0x180] sm:$0xff]
        %v305 = vld [vmem:[%s221 + $0x188] sm:$0xff]
        %v306 = vld [vmem:[%s221 + $0x190] sm:$0xff]
        %v307 = vld [vmem:[%s221 + $0x198] sm:$0xff]
        %v308 = vld [vmem:[%s221 + $0x1a0] sm:$0xff]
        %v309 = vld [vmem:[%s221 + $0x1a8] sm:$0xff]
        %v310 = vld [vmem:[%s221 + $0x1b0] sm:$0xff]
        %v311 = vld [vmem:[%s221 + $0x1b8] sm:$0xff]
        %v312 = vld [vmem:[%s221 + $0x1c0] sm:$0xff]
        %v313 = vld [vmem:[%s221 + $0x1c8] sm:$0xff]
        %v314 = vld [vmem:[%s221 + $0x1d0] sm:$0xff]
        %v315 = vld [vmem:[%s221 + $0x1d8] sm:$0xff]
        %v316 = vld [vmem:[%s221 + $0x1e0] sm:$0xff]
        %v317 = vld [vmem:[%s221 + $0x1e8] sm:$0xff]
        %v318 = vld [vmem:[%s221 + $0x1f0] sm:$0xff]
        %v319 = vld [vmem:[%s221 + $0x1f8] sm:$0xff]
        %v320 = vld [vmem:[%s221 + $0x200] sm:$0xff]
        %v321 = vld [vmem:[%s221 + $0x208] sm:$0xff]
        %v322 = vld [vmem:[%s221 + $0x210] sm:$0xff]
        %v323 = vld [vmem:[%s221 + $0x218] sm:$0xff]
        %v324 = vld [vmem:[%s221 + $0x220] sm:$0xff]
        %v325 = vld [vmem:[%s221 + $0x228] sm:$0xff]
        %v326 = vld [vmem:[%s221 + $0x230] sm:$0xff]
        %v327 = vld [vmem:[%s221 + $0x238] sm:$0xff]
        %v328 = vld [vmem:[%s221 + $0x240] sm:$0xff]
        %v329 = vld [vmem:[%s221 + $0x248] sm:$0xff]
        %v330 = vld [vmem:[%s221 + $0x250] sm:$0xff]
        %v331 = vld [vmem:[%s221 + $0x258] sm:$0xff]
        %v332 = vld [vmem:[%s221 + $0x260] sm:$0xff]
        %v333 = vld [vmem:[%s221 + $0x268] sm:$0xff]
        %v334 = vld [vmem:[%s221 + $0x270] sm:$0xff]
        %v335 = vld [vmem:[%s221 + $0x278] sm:$0xff]
        %v336 = vld [vmem:[%s221 + $0x280] sm:$0xff]
        %v337 = vld [vmem:[%s221 + $0x288] sm:$0xff]
        %v338 = vld [vmem:[%s221 + $0x290] sm:$0xff]
        %v339 = vld [vmem:[%s221 + $0x298] sm:$0xff]
        %v340 = vld [vmem:[%s221 + $0x2a0] sm:$0xff]
        %v341 = vld [vmem:[%s221 + $0x2a8] sm:$0xff]
        %v342 = vld [vmem:[%s221 + $0x2b0] sm:$0xff]
        %v343 = vld [vmem:[%s221 + $0x2b8] sm:$0xff]
        %v344 = vld [vmem:[%s221 + $0x2c0] sm:$0xff]
        %v345 = vld [vmem:[%s221 + $0x2c8] sm:$0xff]
        %v346 = vld [vmem:[%s221 + $0x2d0] sm:$0xff]
        %v347 = vld [vmem:[%s221 + $0x2d8] sm:$0xff]
        %v348 = vld [vmem:[%s221 + $0x2e0] sm:$0xff]
        %v349 = vld [vmem:[%s221 + $0x2e8] sm:$0xff]
        %v350 = vld [vmem:[%s221 + $0x2f0] sm:$0xff]
        %v351 = vld [vmem:[%s221 + $0x2f8] sm:$0xff]
        %v352 = vld [vmem:[%s221 + $0x300] sm:$0xff]
        %v353 = vld [vmem:[%s221 + $0x308] sm:$0xff]
        %v354 = vld [vmem:[%s221 + $0x310] sm:$0xff]
        %v355 = vld [vmem:[%s221 + $0x318] sm:$0xff]
        %v356 = vld [vmem:[%s221 + $0x320] sm:$0xff]
        %v357 = vld [vmem:[%s221 + $0x328] sm:$0xff]
        %v358 = vld [vmem:[%s221 + $0x330] sm:$0xff]
        %v359 = vld [vmem:[%s221 + $0x338] sm:$0xff]
        %v360 = vld [vmem:[%s221 + $0x340] sm:$0xff]
        %v361 = vld [vmem:[%s221 + $0x348] sm:$0xff]
        %v362 = vld [vmem:[%s221 + $0x350] sm:$0xff]
        %v363 = vld [vmem:[%s221 + $0x358] sm:$0xff]
        %v364 = vld [vmem:[%s221 + $0x360] sm:$0xff]
        %v365 = vld [vmem:[%s221 + $0x368] sm:$0xff]
        %v366 = vld [vmem:[%s221 + $0x370] sm:$0xff]
        %v367 = vld [vmem:[%s221 + $0x378] sm:$0xff]
        %v368 = vld [vmem:[%s221 + $0x380] sm:$0xff]
        %v369 = vld [vmem:[%s221 + $0x388] sm:$0xff]
        %v370 = vld [vmem:[%s221 + $0x390] sm:$0xff]
        %v371 = vld [vmem:[%s221 + $0x398] sm:$0xff]
        %v372 = vld [vmem:[%s221 + $0x3a0] sm:$0xff]
        %v373 = vld [vmem:[%s221 + $0x3a8] sm:$0xff]
        %v374 = vld [vmem:[%s221 + $0x3b0] sm:$0xff]
        %v375 = vld [vmem:[%s221 + $0x3b8] sm:$0xff]
        %v376 = vld [vmem:[%s221 + $0x3c0] sm:$0xff]
        %v377 = vld [vmem:[%s221 + $0x3c8] sm:$0xff]
        %v378 = vld [vmem:[%s221 + $0x3d0] sm:$0xff]
        %v379 = vld [vmem:[%s221 + $0x3d8] sm:$0xff]
        %v380 = vld [vmem:[%s221 + $0x3e0] sm:$0xff]
        %v381 = vld [vmem:[%s221 + $0x3e8] sm:$0xff]
        %v382 = vld [vmem:[%s221 + $0x3f0] sm:$0xff]
        %v383 = vld [vmem:[%s221 + $0x3f8] sm:$0xff]
        %v384 = vld [vmem:[#allocation5] sm:$0x1]
        %v385 = vld [vmem:[#allocation5 + $0x1] sm:$0x1]
        %v386 = vld [vmem:[#allocation5 + $0x2] sm:$0x1]
        %v387 = vld [vmem:[#allocation5 + $0x3] sm:$0x1]
        %v388 = vld [vmem:[#allocation5 + $0x4] sm:$0x1]
        %v389 = vld [vmem:[#allocation5 + $0x5] sm:$0x1]
        %v390 = vld [vmem:[#allocation5 + $0x6] sm:$0x1]
        %v391 = vld [vmem:[#allocation5 + $0x7] sm:$0x1]
        %v392 = vld [vmem:[#allocation5 + $0x8] sm:$0x1]
        %v393 = vld [vmem:[#allocation5 + $0x9] sm:$0x1]
        %v394 = vld [vmem:[#allocation5 + $0xa] sm:$0x1]
        %v395 = vld [vmem:[#allocation5 + $0xb] sm:$0x1]
        %v396 = vld [vmem:[#allocation5 + $0xc] sm:$0x1]
        %v397 = vld [vmem:[#allocation5 + $0xd] sm:$0x1]
        %v398 = vld [vmem:[#allocation5 + $0xe] sm:$0x1]
        %v399 = vld [vmem:[#allocation5 + $0xf] sm:$0x1]
        %v400 = vld [vmem:[#allocation5 + $0x10] sm:$0x1]
        %v401 = vld [vmem:[#allocation5 + $0x11] sm:$0x1]
        %v402 = vld [vmem:[#allocation5 + $0x12] sm:$0x1]
        %v403 = vld [vmem:[#allocation5 + $0x13] sm:$0x1]
        %v404 = vld [vmem:[#allocation5 + $0x14] sm:$0x1]
        %v405 = vld [vmem:[#allocation5 + $0x15] sm:$0x1]
        %v406 = vld [vmem:[#allocation5 + $0x16] sm:$0x1]
        %v407 = vld [vmem:[#allocation5 + $0x17] sm:$0x1]
        %v408 = vld [vmem:[#allocation5 + $0x18] sm:$0x1]
        %v409 = vld [vmem:[#allocation5 + $0x19] sm:$0x1]
        %v410 = vld [vmem:[#allocation5 + $0x1a] sm:$0x1]
        %v411 = vld [vmem:[#allocation5 + $0x1b] sm:$0x1]
        %v412 = vld [vmem:[#allocation5 + $0x1c] sm:$0x1]
        %v413 = vld [vmem:[#allocation5 + $0x1d] sm:$0x1]
        %v414 = vld [vmem:[#allocation5 + $0x1e] sm:$0x1]
        %v415 = vld [vmem:[#allocation5 + $0x1f] sm:$0x1]
        %v416 = vld [vmem:[#allocation5 + $0x20] sm:$0x1]
        %v417 = vld [vmem:[#allocation5 + $0x21] sm:$0x1]
        %v418 = vld [vmem:[#allocation5 + $0x22] sm:$0x1]
        %v419 = vld [vmem:[#allocation5 + $0x23] sm:$0x1]
        %v420 = vld [vmem:[#allocation5 + $0x24] sm:$0x1]
        %v421 = vld [vmem:[#allocation5 + $0x25] sm:$0x1]
        %v422 = vld [vmem:[#allocation5 + $0x26] sm:$0x1]
        %v423 = vld [vmem:[#allocation5 + $0x27] sm:$0x1]
        %v424 = vld [vmem:[#allocation5 + $0x28] sm:$0x1]
        %v425 = vld [vmem:[#allocation5 + $0x29] sm:$0x1]
        %v426 = vld [vmem:[#allocation5 + $0x2a] sm:$0x1]
        %v427 = vld [vmem:[#allocation5 + $0x2b] sm:$0x1]
        %v428 = vld [vmem:[#allocation5 + $0x2c] sm:$0x1]
        %v429 = vld [vmem:[#allocation5 + $0x2d] sm:$0x1]
        %v430 = vld [vmem:[#allocation5 + $0x2e] sm:$0x1]
        %v431 = vld [vmem:[#allocation5 + $0x2f] sm:$0x1]
        %v432 = vld [vmem:[#allocation5 + $0x30] sm:$0x1]
        %v433 = vld [vmem:[#allocation5 + $0x31] sm:$0x1]
        %v434 = vld [vmem:[#allocation5 + $0x32] sm:$0x1]
        %v435 = vld [vmem:[#allocation5 + $0x33] sm:$0x1]
        %v436 = vld [vmem:[#allocation5 + $0x34] sm:$0x1]
        %v437 = vld [vmem:[#allocation5 + $0x35] sm:$0x1]
        %v438 = vld [vmem:[#allocation5 + $0x36] sm:$0x1]
        %v439 = vld [vmem:[#allocation5 + $0x37] sm:$0x1]
        %v440 = vld [vmem:[#allocation5 + $0x38] sm:$0x1]
        %v441 = vld [vmem:[#allocation5 + $0x39] sm:$0x1]
        %v442 = vld [vmem:[#allocation5 + $0x3a] sm:$0x1]
        %v443 = vld [vmem:[#allocation5 + $0x3b] sm:$0x1]
        %v444 = vld [vmem:[#allocation5 + $0x3c] sm:$0x1]
        %v445 = vld [vmem:[#allocation5 + $0x3d] sm:$0x1]
        %v446 = vld [vmem:[#allocation5 + $0x3e] sm:$0x1]
        %v447 = vld [vmem:[#allocation5 + $0x3f] sm:$0x1]
        %v448 = vld [vmem:[#allocation5 + $0x40] sm:$0x1]
        %v449 = vld [vmem:[#allocation5 + $0x41] sm:$0x1]
        %v450 = vld [vmem:[#allocation5 + $0x42] sm:$0x1]
        %v451 = vld [vmem:[#allocation5 + $0x43] sm:$0x1]
        %v452 = vld [vmem:[#allocation5 + $0x44] sm:$0x1]
        %v453 = vld [vmem:[#allocation5 + $0x45] sm:$0x1]
        %v454 = vld [vmem:[#allocation5 + $0x46] sm:$0x1]
        %v455 = vld [vmem:[#allocation5 + $0x47] sm:$0x1]
        %v456 = vld [vmem:[#allocation5 + $0x48] sm:$0x1]
        %v457 = vld [vmem:[#allocation5 + $0x49] sm:$0x1]
        %v458 = vld [vmem:[#allocation5 + $0x4a] sm:$0x1]
        %v459 = vld [vmem:[#allocation5 + $0x4b] sm:$0x1]
        %v460 = vld [vmem:[#allocation5 + $0x4c] sm:$0x1]
        %v461 = vld [vmem:[#allocation5 + $0x4d] sm:$0x1]
        %v462 = vld [vmem:[#allocation5 + $0x4e] sm:$0x1]
        %v463 = vld [vmem:[#allocation5 + $0x4f] sm:$0x1]
        %v464 = vld [vmem:[#allocation5 + $0x50] sm:$0x1]
        %v465 = vld [vmem:[#allocation5 + $0x51] sm:$0x1]
        %v466 = vld [vmem:[#allocation5 + $0x52] sm:$0x1]
        %v467 = vld [vmem:[#allocation5 + $0x53] sm:$0x1]
        %v468 = vld [vmem:[#allocation5 + $0x54] sm:$0x1]
        %v469 = vld [vmem:[#allocation5 + $0x55] sm:$0x1]
        %v470 = vld [vmem:[#allocation5 + $0x56] sm:$0x1]
        %v471 = vld [vmem:[#allocation5 + $0x57] sm:$0x1]
        %v472 = vld [vmem:[#allocation5 + $0x58] sm:$0x1]
        %v473 = vld [vmem:[#allocation5 + $0x59] sm:$0x1]
        %v474 = vld [vmem:[#allocation5 + $0x5a] sm:$0x1]
        %v475 = vld [vmem:[#allocation5 + $0x5b] sm:$0x1]
        %v476 = vld [vmem:[#allocation5 + $0x5c] sm:$0x1]
        %v477 = vld [vmem:[#allocation5 + $0x5d] sm:$0x1]
        %v478 = vld [vmem:[#allocation5 + $0x5e] sm:$0x1]
        %v479 = vld [vmem:[#allocation5 + $0x5f] sm:$0x1]
        %v480 = vld [vmem:[#allocation5 + $0x60] sm:$0x1]
        %v481 = vld [vmem:[#allocation5 + $0x61] sm:$0x1]
        %v482 = vld [vmem:[#allocation5 + $0x62] sm:$0x1]
        %v483 = vld [vmem:[#allocation5 + $0x63] sm:$0x1]
        %v484 = vld [vmem:[#allocation5 + $0x64] sm:$0x1]
        %v485 = vld [vmem:[#allocation5 + $0x65] sm:$0x1]
        %v486 = vld [vmem:[#allocation5 + $0x66] sm:$0x1]
        %v487 = vld [vmem:[#allocation5 + $0x67] sm:$0x1]
        %v488 = vld [vmem:[#allocation5 + $0x68] sm:$0x1]
        %v489 = vld [vmem:[#allocation5 + $0x69] sm:$0x1]
        %v490 = vld [vmem:[#allocation5 + $0x6a] sm:$0x1]
        %v491 = vld [vmem:[#allocation5 + $0x6b] sm:$0x1]
        %v492 = vld [vmem:[#allocation5 + $0x6c] sm:$0x1]
        %v493 = vld [vmem:[#allocation5 + $0x6d] sm:$0x1]
        %v494 = vld [vmem:[#allocation5 + $0x6e] sm:$0x1]
        %v495 = vld [vmem:[#allocation5 + $0x6f] sm:$0x1]
        %v496 = vld [vmem:[#allocation5 + $0x70] sm:$0x1]
        %v497 = vld [vmem:[#allocation5 + $0x71] sm:$0x1]
        %v498 = vld [vmem:[#allocation5 + $0x72] sm:$0x1]
        %v499 = vld [vmem:[#allocation5 + $0x73] sm:$0x1]
        %v500 = vld [vmem:[#allocation5 + $0x74] sm:$0x1]
        %v501 = vld [vmem:[#allocation5 + $0x75] sm:$0x1]
        %v502 = vld [vmem:[#allocation5 + $0x76] sm:$0x1]
        %v503 = vld [vmem:[#allocation5 + $0x77] sm:$0x1]
        %v504 = vld [vmem:[#allocation5 + $0x78] sm:$0x1]
        %v505 = vld [vmem:[#allocation5 + $0x79] sm:$0x1]
        %v506 = vld [vmem:[#allocation5 + $0x7a] sm:$0x1]
        %v507 = vld [vmem:[#allocation5 + $0x7b] sm:$0x1]
        %v508 = vld [vmem:[#allocation5 + $0x7c] sm:$0x1]
        %v509 = vld [vmem:[#allocation5 + $0x7d] sm:$0x1]
        %v510 = vld [vmem:[#allocation5 + $0x7e] sm:$0x1]
        %v511 = vld [vmem:[#allocation5 + $0x7f] sm:$0x1]
        %v512 = vld [vmem:[#allocation7] sm:$0x1]
        %v513 = vld [vmem:[#allocation7 + $0x1] sm:$0x1]
        %v514 = vld [vmem:[#allocation7 + $0x2] sm:$0x1]
        %v515 = vld [vmem:[#allocation7 + $0x3] sm:$0x1]
        %v516 = vld [vmem:[#allocation7 + $0x4] sm:$0x1]
        %v517 = vld [vmem:[#allocation7 + $0x5] sm:$0x1]
        %v518 = vld [vmem:[#allocation7 + $0x6] sm:$0x1]
        %v519 = vld [vmem:[#allocation7 + $0x7] sm:$0x1]
        %v520 = vld [vmem:[#allocation7 + $0x8] sm:$0x1]
        %v521 = vld [vmem:[#allocation7 + $0x9] sm:$0x1]
        %v522 = vld [vmem:[#allocation7 + $0xa] sm:$0x1]
        %v523 = vld [vmem:[#allocation7 + $0xb] sm:$0x1]
        %v524 = vld [vmem:[#allocation7 + $0xc] sm:$0x1]
        %v525 = vld [vmem:[#allocation7 + $0xd] sm:$0x1]
        %v526 = vld [vmem:[#allocation7 + $0xe] sm:$0x1]
        %v527 = vld [vmem:[#allocation7 + $0xf] sm:$0x1]
        %v528 = vld [vmem:[#allocation7 + $0x10] sm:$0x1]
        %v529 = vld [vmem:[#allocation7 + $0x11] sm:$0x1]
        %v530 = vld [vmem:[#allocation7 + $0x12] sm:$0x1]
        %v531 = vld [vmem:[#allocation7 + $0x13] sm:$0x1]
        %v532 = vld [vmem:[#allocation7 + $0x14] sm:$0x1]
        %v533 = vld [vmem:[#allocation7 + $0x15] sm:$0x1]
        %v534 = vld [vmem:[#allocation7 + $0x16] sm:$0x1]
        %v535 = vld [vmem:[#allocation7 + $0x17] sm:$0x1]
        %v536 = vld [vmem:[#allocation7 + $0x18] sm:$0x1]
        %v537 = vld [vmem:[#allocation7 + $0x19] sm:$0x1]
        %v538 = vld [vmem:[#allocation7 + $0x1a] sm:$0x1]
        %v539 = vld [vmem:[#allocation7 + $0x1b] sm:$0x1]
        %v540 = vld [vmem:[#allocation7 + $0x1c] sm:$0x1]
        %v541 = vld [vmem:[#allocation7 + $0x1d] sm:$0x1]
        %v542 = vld [vmem:[#allocation7 + $0x1e] sm:$0x1]
        %v543 = vld [vmem:[#allocation7 + $0x1f] sm:$0x1]
        %v544 = vld [vmem:[#allocation7 + $0x20] sm:$0x1]
        %v545 = vld [vmem:[#allocation7 + $0x21] sm:$0x1]
        %v546 = vld [vmem:[#allocation7 + $0x22] sm:$0x1]
        %v547 = vld [vmem:[#allocation7 + $0x23] sm:$0x1]
        %v548 = vld [vmem:[#allocation7 + $0x24] sm:$0x1]
        %v549 = vld [vmem:[#allocation7 + $0x25] sm:$0x1]
        %v550 = vld [vmem:[#allocation7 + $0x26] sm:$0x1]
        %v551 = vld [vmem:[#allocation7 + $0x27] sm:$0x1]
        %v552 = vld [vmem:[#allocation7 + $0x28] sm:$0x1]
        %v553 = vld [vmem:[#allocation7 + $0x29] sm:$0x1]
        %v554 = vld [vmem:[#allocation7 + $0x2a] sm:$0x1]
        %v555 = vld [vmem:[#allocation7 + $0x2b] sm:$0x1]
        %v556 = vld [vmem:[#allocation7 + $0x2c] sm:$0x1]
        %v557 = vld [vmem:[#allocation7 + $0x2d] sm:$0x1]
        %v558 = vld [vmem:[#allocation7 + $0x2e] sm:$0x1]
        %v559 = vld [vmem:[#allocation7 + $0x2f] sm:$0x1]
        %v560 = vld [vmem:[#allocation7 + $0x30] sm:$0x1]
        %v561 = vld [vmem:[#allocation7 + $0x31] sm:$0x1]
        %v562 = vld [vmem:[#allocation7 + $0x32] sm:$0x1]
        %v563 = vld [vmem:[#allocation7 + $0x33] sm:$0x1]
        %v564 = vld [vmem:[#allocation7 + $0x34] sm:$0x1]
        %v565 = vld [vmem:[#allocation7 + $0x35] sm:$0x1]
        %v566 = vld [vmem:[#allocation7 + $0x36] sm:$0x1]
        %v567 = vld [vmem:[#allocation7 + $0x37] sm:$0x1]
        %v568 = vld [vmem:[#allocation7 + $0x38] sm:$0x1]
        %v569 = vld [vmem:[#allocation7 + $0x39] sm:$0x1]
        %v570 = vld [vmem:[#allocation7 + $0x3a] sm:$0x1]
        %v571 = vld [vmem:[#allocation7 + $0x3b] sm:$0x1]
        %v572 = vld [vmem:[#allocation7 + $0x3c] sm:$0x1]
        %v573 = vld [vmem:[#allocation7 + $0x3d] sm:$0x1]
        %v574 = vld [vmem:[#allocation7 + $0x3e] sm:$0x1]
        %v575 = vld [vmem:[#allocation7 + $0x3f] sm:$0x1]
        %v576 = vld [vmem:[#allocation7 + $0x40] sm:$0x1]
        %v577 = vld [vmem:[#allocation7 + $0x41] sm:$0x1]
        %v578 = vld [vmem:[#allocation7 + $0x42] sm:$0x1]
        %v579 = vld [vmem:[#allocation7 + $0x43] sm:$0x1]
        %v580 = vld [vmem:[#allocation7 + $0x44] sm:$0x1]
        %v581 = vld [vmem:[#allocation7 + $0x45] sm:$0x1]
        %v582 = vld [vmem:[#allocation7 + $0x46] sm:$0x1]
        %v583 = vld [vmem:[#allocation7 + $0x47] sm:$0x1]
        %v584 = vld [vmem:[#allocation7 + $0x48] sm:$0x1]
        %v585 = vld [vmem:[#allocation7 + $0x49] sm:$0x1]
        %v586 = vld [vmem:[#allocation7 + $0x4a] sm:$0x1]
        %v587 = vld [vmem:[#allocation7 + $0x4b] sm:$0x1]
        %v588 = vld [vmem:[#allocation7 + $0x4c] sm:$0x1]
        %v589 = vld [vmem:[#allocation7 + $0x4d] sm:$0x1]
        %v590 = vld [vmem:[#allocation7 + $0x4e] sm:$0x1]
        %v591 = vld [vmem:[#allocation7 + $0x4f] sm:$0x1]
        %v592 = vld [vmem:[#allocation7 + $0x50] sm:$0x1]
        %v593 = vld [vmem:[#allocation7 + $0x51] sm:$0x1]
        %v594 = vld [vmem:[#allocation7 + $0x52] sm:$0x1]
        %v595 = vld [vmem:[#allocation7 + $0x53] sm:$0x1]
        %v596 = vld [vmem:[#allocation7 + $0x54] sm:$0x1]
        %v597 = vld [vmem:[#allocation7 + $0x55] sm:$0x1]
        %v598 = vld [vmem:[#allocation7 + $0x56] sm:$0x1]
        %v599 = vld [vmem:[#allocation7 + $0x57] sm:$0x1]
        %v600 = vld [vmem:[#allocation7 + $0x58] sm:$0x1]
        %v601 = vld [vmem:[#allocation7 + $0x59] sm:$0x1]
        %v602 = vld [vmem:[#allocation7 + $0x5a] sm:$0x1]
        %v603 = vld [vmem:[#allocation7 + $0x5b] sm:$0x1]
        %v604 = vld [vmem:[#allocation7 + $0x5c] sm:$0x1]
        %v605 = vld [vmem:[#allocation7 + $0x5d] sm:$0x1]
        %v606 = vld [vmem:[#allocation7 + $0x5e] sm:$0x1]
        %v607 = vld [vmem:[#allocation7 + $0x5f] sm:$0x1]
        %v608 = vld [vmem:[#allocation7 + $0x60] sm:$0x1]
        %v609 = vld [vmem:[#allocation7 + $0x61] sm:$0x1]
        %v610 = vld [vmem:[#allocation7 + $0x62] sm:$0x1]
        %v611 = vld [vmem:[#allocation7 + $0x63] sm:$0x1]
        %v612 = vld [vmem:[#allocation7 + $0x64] sm:$0x1]
        %v613 = vld [vmem:[#allocation7 + $0x65] sm:$0x1]
        %v614 = vld [vmem:[#allocation7 + $0x66] sm:$0x1]
        %v615 = vld [vmem:[#allocation7 + $0x67] sm:$0x1]
        %v616 = vld [vmem:[#allocation7 + $0x68] sm:$0x1]
        %v617 = vld [vmem:[#allocation7 + $0x69] sm:$0x1]
        %v618 = vld [vmem:[#allocation7 + $0x6a] sm:$0x1]
        %v619 = vld [vmem:[#allocation7 + $0x6b] sm:$0x1]
        %v620 = vld [vmem:[#allocation7 + $0x6c] sm:$0x1]
        %v621 = vld [vmem:[#allocation7 + $0x6d] sm:$0x1]
        %v622 = vld [vmem:[#allocation7 + $0x6e] sm:$0x1]
        %v623 = vld [vmem:[#allocation7 + $0x6f] sm:$0x1]
        %v624 = vld [vmem:[#allocation7 + $0x70] sm:$0x1]
        %v625 = vld [vmem:[#allocation7 + $0x71] sm:$0x1]
        %v626 = vld [vmem:[#allocation7 + $0x72] sm:$0x1]
        %v627 = vld [vmem:[#allocation7 + $0x73] sm:$0x1]
        %v628 = vld [vmem:[#allocation7 + $0x74] sm:$0x1]
        %v629 = vld [vmem:[#allocation7 + $0x75] sm:$0x1]
        %v630 = vld [vmem:[#allocation7 + $0x76] sm:$0x1]
        %v631 = vld [vmem:[#allocation7 + $0x77] sm:$0x1]
        %v632 = vld [vmem:[#allocation7 + $0x78] sm:$0x1]
        %v633 = vld [vmem:[#allocation7 + $0x79] sm:$0x1]
        %v634 = vld [vmem:[#allocation7 + $0x7a] sm:$0x1]
        %v635 = vld [vmem:[#allocation7 + $0x7b] sm:$0x1]
        %v636 = vld [vmem:[#allocation7 + $0x7c] sm:$0x1]
        %v637 = vld [vmem:[#allocation7 + $0x7d] sm:$0x1]
        %v638 = vld [vmem:[#allocation7 + $0x7e] sm:$0x1]
        %v639 = vld [vmem:[#allocation7 + $0x7f] sm:$0x1]
        %640 = vrot.lane.b32.xlu0 %v256, 64
        %v641 = vpop.permute.xlu0 %640
        %642 = vrot.lane.b32.xlu0 %v257, 64
        %v643 = vpop.permute.xlu0 %642
        %644 = vrot.lane.b32.xlu0 %v258, 64
        %v645 = vpop.permute.xlu0 %644
        %646 = vrot.lane.b32.xlu0 %v259, 64
        %v647 = vpop.permute.xlu0 %646
        %648 = vrot.lane.b32.xlu0 %v260, 64
        %v649 = vpop.permute.xlu0 %648
        %650 = vrot.lane.b32.xlu0 %v261, 64
        %v651 = vpop.permute.xlu0 %650
        %652 = vrot.lane.b32.xlu0 %v262, 64
        %v653 = vpop.permute.xlu0 %652
        %654 = vrot.lane.b32.xlu0 %v263, 64
        %v655 = vpop.permute.xlu0 %654
        %656 = vrot.lane.b32.xlu0 %v264, 64
        %v657 = vpop.permute.xlu0 %656
        %658 = vrot.lane.b32.xlu0 %v265, 64
        %v659 = vpop.permute.xlu0 %658
        %660 = vrot.lane.b32.xlu0 %v266, 64
        %v661 = vpop.permute.xlu0 %660
        %662 = vrot.lane.b32.xlu0 %v267, 64
        %v663 = vpop.permute.xlu0 %662
        %664 = vrot.lane.b32.xlu0 %v268, 64
        %v665 = vpop.permute.xlu0 %664
        %666 = vrot.lane.b32.xlu0 %v269, 64
        %v667 = vpop.permute.xlu0 %666
        %668 = vrot.lane.b32.xlu0 %v270, 64
        %v669 = vpop.permute.xlu0 %668
        %670 = vrot.lane.b32.xlu0 %v271, 64
        %v671 = vpop.permute.xlu0 %670
        %672 = vrot.lane.b32.xlu0 %v272, 64
        %v673 = vpop.permute.xlu0 %672
        %674 = vrot.lane.b32.xlu0 %v273, 64
        %v675 = vpop.permute.xlu0 %674
        %676 = vrot.lane.b32.xlu0 %v274, 64
        %v677 = vpop.permute.xlu0 %676
        %678 = vrot.lane.b32.xlu0 %v275, 64
        %v679 = vpop.permute.xlu0 %678
        %680 = vrot.lane.b32.xlu0 %v276, 64
        %v681 = vpop.permute.xlu0 %680
        %682 = vrot.lane.b32.xlu0 %v277, 64
        %v683 = vpop.permute.xlu0 %682
        %684 = vrot.lane.b32.xlu0 %v278, 64
        %v685 = vpop.permute.xlu0 %684
        %686 = vrot.lane.b32.xlu0 %v279, 64
        %v687 = vpop.permute.xlu0 %686
        %688 = vrot.lane.b32.xlu0 %v280, 64
        %v689 = vpop.permute.xlu0 %688
        %690 = vrot.lane.b32.xlu0 %v281, 64
        %v691 = vpop.permute.xlu0 %690
        %692 = vrot.lane.b32.xlu0 %v282, 64
        %v693 = vpop.permute.xlu0 %692
        %694 = vrot.lane.b32.xlu0 %v283, 64
        %v695 = vpop.permute.xlu0 %694
        %696 = vrot.lane.b32.xlu0 %v284, 64
        %v697 = vpop.permute.xlu0 %696
        %698 = vrot.lane.b32.xlu0 %v285, 64
        %v699 = vpop.permute.xlu0 %698
        %700 = vrot.lane.b32.xlu0 %v286, 64
        %v701 = vpop.permute.xlu0 %700
        %702 = vrot.lane.b32.xlu0 %v287, 64
        %v703 = vpop.permute.xlu0 %702
        %704 = vrot.lane.b32.xlu0 %v288, 64
        %v705 = vpop.permute.xlu0 %704
        %706 = vrot.lane.b32.xlu0 %v289, 64
        %v707 = vpop.permute.xlu0 %706
        %708 = vrot.lane.b32.xlu0 %v290, 64
        %v709 = vpop.permute.xlu0 %708
        %710 = vrot.lane.b32.xlu0 %v291, 64
        %v711 = vpop.permute.xlu0 %710
        %712 = vrot.lane.b32.xlu0 %v292, 64
        %v713 = vpop.permute.xlu0 %712
        %714 = vrot.lane.b32.xlu0 %v293, 64
        %v715 = vpop.permute.xlu0 %714
        %716 = vrot.lane.b32.xlu0 %v294, 64
        %v717 = vpop.permute.xlu0 %716
        %718 = vrot.lane.b32.xlu0 %v295, 64
        %v719 = vpop.permute.xlu0 %718
        %720 = vrot.lane.b32.xlu0 %v296, 64
        %v721 = vpop.permute.xlu0 %720
        %722 = vrot.lane.b32.xlu0 %v297, 64
        %v723 = vpop.permute.xlu0 %722
        %724 = vrot.lane.b32.xlu0 %v298, 64
        %v725 = vpop.permute.xlu0 %724
        %726 = vrot.lane.b32.xlu0 %v299, 64
        %v727 = vpop.permute.xlu0 %726
        %728 = vrot.lane.b32.xlu0 %v300, 64
        %v729 = vpop.permute.xlu0 %728
        %730 = vrot.lane.b32.xlu0 %v301, 64
        %v731 = vpop.permute.xlu0 %730
        %732 = vrot.lane.b32.xlu0 %v302, 64
        %v733 = vpop.permute.xlu0 %732
        %734 = vrot.lane.b32.xlu0 %v303, 64
        %v735 = vpop.permute.xlu0 %734
        %736 = vrot.lane.b32.xlu0 %v304, 64
        %v737 = vpop.permute.xlu0 %736
        %738 = vrot.lane.b32.xlu0 %v305, 64
        %v739 = vpop.permute.xlu0 %738
        %740 = vrot.lane.b32.xlu0 %v306, 64
        %v741 = vpop.permute.xlu0 %740
        %742 = vrot.lane.b32.xlu0 %v307, 64
        %v743 = vpop.permute.xlu0 %742
        %744 = vrot.lane.b32.xlu0 %v308, 64
        %v745 = vpop.permute.xlu0 %744
        %746 = vrot.lane.b32.xlu0 %v309, 64
        %v747 = vpop.permute.xlu0 %746
        %748 = vrot.lane.b32.xlu0 %v310, 64
        %v749 = vpop.permute.xlu0 %748
        %750 = vrot.lane.b32.xlu0 %v311, 64
        %v751 = vpop.permute.xlu0 %750
        %752 = vrot.lane.b32.xlu0 %v312, 64
        %v753 = vpop.permute.xlu0 %752
        %754 = vrot.lane.b32.xlu0 %v313, 64
        %v755 = vpop.permute.xlu0 %754
        %756 = vrot.lane.b32.xlu0 %v314, 64
        %v757 = vpop.permute.xlu0 %756
        %758 = vrot.lane.b32.xlu0 %v315, 64
        %v759 = vpop.permute.xlu0 %758
        %760 = vrot.lane.b32.xlu0 %v316, 64
        %v761 = vpop.permute.xlu0 %760
        %762 = vrot.lane.b32.xlu0 %v317, 64
        %v763 = vpop.permute.xlu0 %762
        %764 = vrot.lane.b32.xlu0 %v318, 64
        %v765 = vpop.permute.xlu0 %764
        %766 = vrot.lane.b32.xlu0 %v319, 64
        %v767 = vpop.permute.xlu0 %766
        %768 = vrot.lane.b32.xlu0 %v320, 64
        %v769 = vpop.permute.xlu0 %768
        %770 = vrot.lane.b32.xlu0 %v321, 64
        %v771 = vpop.permute.xlu0 %770
        %772 = vrot.lane.b32.xlu0 %v322, 64
        %v773 = vpop.permute.xlu0 %772
        %774 = vrot.lane.b32.xlu0 %v323, 64
        %v775 = vpop.permute.xlu0 %774
        %776 = vrot.lane.b32.xlu0 %v324, 64
        %v777 = vpop.permute.xlu0 %776
        %778 = vrot.lane.b32.xlu0 %v325, 64
        %v779 = vpop.permute.xlu0 %778
        %780 = vrot.lane.b32.xlu0 %v326, 64
        %v781 = vpop.permute.xlu0 %780
        %782 = vrot.lane.b32.xlu0 %v327, 64
        %v783 = vpop.permute.xlu0 %782
        %784 = vrot.lane.b32.xlu0 %v328, 64
        %v785 = vpop.permute.xlu0 %784
        %786 = vrot.lane.b32.xlu0 %v329, 64
        %v787 = vpop.permute.xlu0 %786
        %788 = vrot.lane.b32.xlu0 %v330, 64
        %v789 = vpop.permute.xlu0 %788
        %790 = vrot.lane.b32.xlu0 %v331, 64
        %v791 = vpop.permute.xlu0 %790
        %792 = vrot.lane.b32.xlu0 %v332, 64
        %v793 = vpop.permute.xlu0 %792
        %794 = vrot.lane.b32.xlu0 %v333, 64
        %v795 = vpop.permute.xlu0 %794
        %796 = vrot.lane.b32.xlu0 %v334, 64
        %v797 = vpop.permute.xlu0 %796
        %798 = vrot.lane.b32.xlu0 %v335, 64
        %v799 = vpop.permute.xlu0 %798
        %800 = vrot.lane.b32.xlu0 %v336, 64
        %v801 = vpop.permute.xlu0 %800
        %802 = vrot.lane.b32.xlu0 %v337, 64
        %v803 = vpop.permute.xlu0 %802
        %804 = vrot.lane.b32.xlu0 %v338, 64
        %v805 = vpop.permute.xlu0 %804
        %806 = vrot.lane.b32.xlu0 %v339, 64
        %v807 = vpop.permute.xlu0 %806
        %808 = vrot.lane.b32.xlu0 %v340, 64
        %v809 = vpop.permute.xlu0 %808
        %810 = vrot.lane.b32.xlu0 %v341, 64
        %v811 = vpop.permute.xlu0 %810
        %812 = vrot.lane.b32.xlu0 %v342, 64
        %v813 = vpop.permute.xlu0 %812
        %814 = vrot.lane.b32.xlu0 %v343, 64
        %v815 = vpop.permute.xlu0 %814
        %816 = vrot.lane.b32.xlu0 %v344, 64
        %v817 = vpop.permute.xlu0 %816
        %818 = vrot.lane.b32.xlu0 %v345, 64
        %v819 = vpop.permute.xlu0 %818
        %820 = vrot.lane.b32.xlu0 %v346, 64
        %v821 = vpop.permute.xlu0 %820
        %822 = vrot.lane.b32.xlu0 %v347, 64
        %v823 = vpop.permute.xlu0 %822
        %824 = vrot.lane.b32.xlu0 %v348, 64
        %v825 = vpop.permute.xlu0 %824
        %826 = vrot.lane.b32.xlu0 %v349, 64
        %v827 = vpop.permute.xlu0 %826
        %828 = vrot.lane.b32.xlu0 %v350, 64
        %v829 = vpop.permute.xlu0 %828
        %830 = vrot.lane.b32.xlu0 %v351, 64
        %v831 = vpop.permute.xlu0 %830
        %832 = vrot.lane.b32.xlu0 %v352, 64
        %v833 = vpop.permute.xlu0 %832
        %834 = vrot.lane.b32.xlu0 %v353, 64
        %v835 = vpop.permute.xlu0 %834
        %836 = vrot.lane.b32.xlu0 %v354, 64
        %v837 = vpop.permute.xlu0 %836
        %838 = vrot.lane.b32.xlu0 %v355, 64
        %v839 = vpop.permute.xlu0 %838
        %840 = vrot.lane.b32.xlu0 %v356, 64
        %v841 = vpop.permute.xlu0 %840
        %842 = vrot.lane.b32.xlu0 %v357, 64
        %v843 = vpop.permute.xlu0 %842
        %844 = vrot.lane.b32.xlu0 %v358, 64
        %v845 = vpop.permute.xlu0 %844
        %846 = vrot.lane.b32.xlu0 %v359, 64
        %v847 = vpop.permute.xlu0 %846
        %848 = vrot.lane.b32.xlu0 %v360, 64
        %v849 = vpop.permute.xlu0 %848
        %850 = vrot.lane.b32.xlu0 %v361, 64
        %v851 = vpop.permute.xlu0 %850
        %852 = vrot.lane.b32.xlu0 %v362, 64
        %v853 = vpop.permute.xlu0 %852
        %854 = vrot.lane.b32.xlu0 %v363, 64
        %v855 = vpop.permute.xlu0 %854
        %856 = vrot.lane.b32.xlu0 %v364, 64
        %v857 = vpop.permute.xlu0 %856
        %858 = vrot.lane.b32.xlu0 %v365, 64
        %v859 = vpop.permute.xlu0 %858
        %860 = vrot.lane.b32.xlu0 %v366, 64
        %v861 = vpop.permute.xlu0 %860
        %862 = vrot.lane.b32.xlu0 %v367, 64
        %v863 = vpop.permute.xlu0 %862
        %864 = vrot.lane.b32.xlu0 %v368, 64
        %v865 = vpop.permute.xlu0 %864
        %866 = vrot.lane.b32.xlu0 %v369, 64
        %v867 = vpop.permute.xlu0 %866
        %868 = vrot.lane.b32.xlu0 %v370, 64
        %v869 = vpop.permute.xlu0 %868
        %870 = vrot.lane.b32.xlu0 %v371, 64
        %v871 = vpop.permute.xlu0 %870
        %872 = vrot.lane.b32.xlu0 %v372, 64
        %v873 = vpop.permute.xlu0 %872
        %874 = vrot.lane.b32.xlu0 %v373, 64
        %v875 = vpop.permute.xlu0 %874
        %876 = vrot.lane.b32.xlu0 %v374, 64
        %v877 = vpop.permute.xlu0 %876
        %878 = vrot.lane.b32.xlu0 %v375, 64
        %v879 = vpop.permute.xlu0 %878
        %880 = vrot.lane.b32.xlu0 %v376, 64
        %v881 = vpop.permute.xlu0 %880
        %882 = vrot.lane.b32.xlu0 %v377, 64
        %v883 = vpop.permute.xlu0 %882
        %884 = vrot.lane.b32.xlu0 %v378, 64
        %v885 = vpop.permute.xlu0 %884
        %886 = vrot.lane.b32.xlu0 %v379, 64
        %v887 = vpop.permute.xlu0 %886
        %888 = vrot.lane.b32.xlu0 %v380, 64
        %v889 = vpop.permute.xlu0 %888
        %890 = vrot.lane.b32.xlu0 %v381, 64
        %v891 = vpop.permute.xlu0 %890
        %892 = vrot.lane.b32.xlu0 %v382, 64
        %v893 = vpop.permute.xlu0 %892
        %894 = vrot.lane.b32.xlu0 %v383, 64
        %v895 = vpop.permute.xlu0 %894
        %v1024 = vlaneseq
        %v1025 = vshrl.u32 %v1024, 7
        %v1026 = vsub.s32 0, %v1025
        %v1027 = vrot.slane %v384, %v1026
        %v1028 = vlaneseq
        %v1029 = vshrl.u32 %v1028, 7
        %v1030 = vsub.s32 0, %v1029
        %v1031 = vrot.slane %v385, %v1030
        %v1032 = vlaneseq
        %v1033 = vshrl.u32 %v1032, 7
        %v1034 = vsub.s32 0, %v1033
        %v1035 = vrot.slane %v386, %v1034
        %v1036 = vlaneseq
        %v1037 = vshrl.u32 %v1036, 7
        %v1038 = vsub.s32 0, %v1037
        %v1039 = vrot.slane %v387, %v1038
        %v1040 = vlaneseq
        %v1041 = vshrl.u32 %v1040, 7
        %v1042 = vsub.s32 0, %v1041
        %v1043 = vrot.slane %v388, %v1042
        %v1044 = vlaneseq
        %v1045 = vshrl.u32 %v1044, 7
        %v1046 = vsub.s32 0, %v1045
        %v1047 = vrot.slane %v389, %v1046
        %v1048 = vlaneseq
        %v1049 = vshrl.u32 %v1048, 7
        %v1050 = vsub.s32 0, %v1049
        %v1051 = vrot.slane %v390, %v1050
        %v1052 = vlaneseq
        %v1053 = vshrl.u32 %v1052, 7
        %v1054 = vsub.s32 0, %v1053
        %v1055 = vrot.slane %v391, %v1054
        %v1056 = vlaneseq
        %v1057 = vshrl.u32 %v1056, 7
        %v1058 = vsub.s32 0, %v1057
        %v1059 = vrot.slane %v392, %v1058
        %v1060 = vlaneseq
        %v1061 = vshrl.u32 %v1060, 7
        %v1062 = vsub.s32 0, %v1061
        %v1063 = vrot.slane %v393, %v1062
        %v1064 = vlaneseq
        %v1065 = vshrl.u32 %v1064, 7
        %v1066 = vsub.s32 0, %v1065
        %v1067 = vrot.slane %v394, %v1066
        %v1068 = vlaneseq
        %v1069 = vshrl.u32 %v1068, 7
        %v1070 = vsub.s32 0, %v1069
        %v1071 = vrot.slane %v395, %v1070
        %v1072 = vlaneseq
        %v1073 = vshrl.u32 %v1072, 7
        %v1074 = vsub.s32 0, %v1073
        %v1075 = vrot.slane %v396, %v1074
        %v1076 = vlaneseq
        %v1077 = vshrl.u32 %v1076, 7
        %v1078 = vsub.s32 0, %v1077
        %v1079 = vrot.slane %v397, %v1078
        %v1080 = vlaneseq
        %v1081 = vshrl.u32 %v1080, 7
        %v1082 = vsub.s32 0, %v1081
        %v1083 = vrot.slane %v398, %v1082
        %v1084 = vlaneseq
        %v1085 = vshrl.u32 %v1084, 7
        %v1086 = vsub.s32 0, %v1085
        %v1087 = vrot.slane %v399, %v1086
        %v1088 = vlaneseq
        %v1089 = vshrl.u32 %v1088, 7
        %v1090 = vsub.s32 0, %v1089
        %v1091 = vrot.slane %v400, %v1090
        %v1092 = vlaneseq
        %v1093 = vshrl.u32 %v1092, 7
        %v1094 = vsub.s32 0, %v1093
        %v1095 = vrot.slane %v401, %v1094
        %v1096 = vlaneseq
        %v1097 = vshrl.u32 %v1096, 7
        %v1098 = vsub.s32 0, %v1097
        %v1099 = vrot.slane %v402, %v1098
        %v1100 = vlaneseq
        %v1101 = vshrl.u32 %v1100, 7
        %v1102 = vsub.s32 0, %v1101
        %v1103 = vrot.slane %v403, %v1102
        %v1104 = vlaneseq
        %v1105 = vshrl.u32 %v1104, 7
        %v1106 = vsub.s32 0, %v1105
        %v1107 = vrot.slane %v404, %v1106
        %v1108 = vlaneseq
        %v1109 = vshrl.u32 %v1108, 7
        %v1110 = vsub.s32 0, %v1109
        %v1111 = vrot.slane %v405, %v1110
        %v1112 = vlaneseq
        %v1113 = vshrl.u32 %v1112, 7
        %v1114 = vsub.s32 0, %v1113
        %v1115 = vrot.slane %v406, %v1114
        %v1116 = vlaneseq
        %v1117 = vshrl.u32 %v1116, 7
        %v1118 = vsub.s32 0, %v1117
        %v1119 = vrot.slane %v407, %v1118
        %v1120 = vlaneseq
        %v1121 = vshrl.u32 %v1120, 7
        %v1122 = vsub.s32 0, %v1121
        %v1123 = vrot.slane %v408, %v1122
        %v1124 = vlaneseq
        %v1125 = vshrl.u32 %v1124, 7
        %v1126 = vsub.s32 0, %v1125
        %v1127 = vrot.slane %v409, %v1126
        %v1128 = vlaneseq
        %v1129 = vshrl.u32 %v1128, 7
        %v1130 = vsub.s32 0, %v1129
        %v1131 = vrot.slane %v410, %v1130
        %v1132 = vlaneseq
        %v1133 = vshrl.u32 %v1132, 7
        %v1134 = vsub.s32 0, %v1133
        %v1135 = vrot.slane %v411, %v1134
        %v1136 = vlaneseq
        %v1137 = vshrl.u32 %v1136, 7
        %v1138 = vsub.s32 0, %v1137
        %v1139 = vrot.slane %v412, %v1138
        %v1140 = vlaneseq
        %v1141 = vshrl.u32 %v1140, 7
        %v1142 = vsub.s32 0, %v1141
        %v1143 = vrot.slane %v413, %v1142
        %v1144 = vlaneseq
        %v1145 = vshrl.u32 %v1144, 7
        %v1146 = vsub.s32 0, %v1145
        %v1147 = vrot.slane %v414, %v1146
        %v1148 = vlaneseq
        %v1149 = vshrl.u32 %v1148, 7
        %v1150 = vsub.s32 0, %v1149
        %v1151 = vrot.slane %v415, %v1150
        %v1152 = vlaneseq
        %v1153 = vshrl.u32 %v1152, 7
        %v1154 = vsub.s32 0, %v1153
        %v1155 = vrot.slane %v416, %v1154
        %v1156 = vlaneseq
        %v1157 = vshrl.u32 %v1156, 7
        %v1158 = vsub.s32 0, %v1157
        %v1159 = vrot.slane %v417, %v1158
        %v1160 = vlaneseq
        %v1161 = vshrl.u32 %v1160, 7
        %v1162 = vsub.s32 0, %v1161
        %v1163 = vrot.slane %v418, %v1162
        %v1164 = vlaneseq
        %v1165 = vshrl.u32 %v1164, 7
        %v1166 = vsub.s32 0, %v1165
        %v1167 = vrot.slane %v419, %v1166
        %v1168 = vlaneseq
        %v1169 = vshrl.u32 %v1168, 7
        %v1170 = vsub.s32 0, %v1169
        %v1171 = vrot.slane %v420, %v1170
        %v1172 = vlaneseq
        %v1173 = vshrl.u32 %v1172, 7
        %v1174 = vsub.s32 0, %v1173
        %v1175 = vrot.slane %v421, %v1174
        %v1176 = vlaneseq
        %v1177 = vshrl.u32 %v1176, 7
        %v1178 = vsub.s32 0, %v1177
        %v1179 = vrot.slane %v422, %v1178
        %v1180 = vlaneseq
        %v1181 = vshrl.u32 %v1180, 7
        %v1182 = vsub.s32 0, %v1181
        %v1183 = vrot.slane %v423, %v1182
        %v1184 = vlaneseq
        %v1185 = vshrl.u32 %v1184, 7
        %v1186 = vsub.s32 0, %v1185
        %v1187 = vrot.slane %v424, %v1186
        %v1188 = vlaneseq
        %v1189 = vshrl.u32 %v1188, 7
        %v1190 = vsub.s32 0, %v1189
        %v1191 = vrot.slane %v425, %v1190
        %v1192 = vlaneseq
        %v1193 = vshrl.u32 %v1192, 7
        %v1194 = vsub.s32 0, %v1193
        %v1195 = vrot.slane %v426, %v1194
        %v1196 = vlaneseq
        %v1197 = vshrl.u32 %v1196, 7
        %v1198 = vsub.s32 0, %v1197
        %v1199 = vrot.slane %v427, %v1198
        %v1200 = vlaneseq
        %v1201 = vshrl.u32 %v1200, 7
        %v1202 = vsub.s32 0, %v1201
        %v1203 = vrot.slane %v428, %v1202
        %v1204 = vlaneseq
        %v1205 = vshrl.u32 %v1204, 7
        %v1206 = vsub.s32 0, %v1205
        %v1207 = vrot.slane %v429, %v1206
        %v1208 = vlaneseq
        %v1209 = vshrl.u32 %v1208, 7
        %v1210 = vsub.s32 0, %v1209
        %v1211 = vrot.slane %v430, %v1210
        %v1212 = vlaneseq
        %v1213 = vshrl.u32 %v1212, 7
        %v1214 = vsub.s32 0, %v1213
        %v1215 = vrot.slane %v431, %v1214
        %v1216 = vlaneseq
        %v1217 = vshrl.u32 %v1216, 7
        %v1218 = vsub.s32 0, %v1217
        %v1219 = vrot.slane %v432, %v1218
        %v1220 = vlaneseq
        %v1221 = vshrl.u32 %v1220, 7
        %v1222 = vsub.s32 0, %v1221
        %v1223 = vrot.slane %v433, %v1222
        %v1224 = vlaneseq
        %v1225 = vshrl.u32 %v1224, 7
        %v1226 = vsub.s32 0, %v1225
        %v1227 = vrot.slane %v434, %v1226
        %v1228 = vlaneseq
        %v1229 = vshrl.u32 %v1228, 7
        %v1230 = vsub.s32 0, %v1229
        %v1231 = vrot.slane %v435, %v1230
        %v1232 = vlaneseq
        %v1233 = vshrl.u32 %v1232, 7
        %v1234 = vsub.s32 0, %v1233
        %v1235 = vrot.slane %v436, %v1234
        %v1236 = vlaneseq
        %v1237 = vshrl.u32 %v1236, 7
        %v1238 = vsub.s32 0, %v1237
        %v1239 = vrot.slane %v437, %v1238
        %v1240 = vlaneseq
        %v1241 = vshrl.u32 %v1240, 7
        %v1242 = vsub.s32 0, %v1241
        %v1243 = vrot.slane %v438, %v1242
        %v1244 = vlaneseq
        %v1245 = vshrl.u32 %v1244, 7
        %v1246 = vsub.s32 0, %v1245
        %v1247 = vrot.slane %v439, %v1246
        %v1248 = vlaneseq
        %v1249 = vshrl.u32 %v1248, 7
        %v1250 = vsub.s32 0, %v1249
        %v1251 = vrot.slane %v440, %v1250
        %v1252 = vlaneseq
        %v1253 = vshrl.u32 %v1252, 7
        %v1254 = vsub.s32 0, %v1253
        %v1255 = vrot.slane %v441, %v1254
        %v1256 = vlaneseq
        %v1257 = vshrl.u32 %v1256, 7
        %v1258 = vsub.s32 0, %v1257
        %v1259 = vrot.slane %v442, %v1258
        %v1260 = vlaneseq
        %v1261 = vshrl.u32 %v1260, 7
        %v1262 = vsub.s32 0, %v1261
        %v1263 = vrot.slane %v443, %v1262
        %v1264 = vlaneseq
        %v1265 = vshrl.u32 %v1264, 7
        %v1266 = vsub.s32 0, %v1265
        %v1267 = vrot.slane %v444, %v1266
        %v1268 = vlaneseq
        %v1269 = vshrl.u32 %v1268, 7
        %v1270 = vsub.s32 0, %v1269
        %v1271 = vrot.slane %v445, %v1270
        %v1272 = vlaneseq
        %v1273 = vshrl.u32 %v1272, 7
        %v1274 = vsub.s32 0, %v1273
        %v1275 = vrot.slane %v446, %v1274
        %v1276 = vlaneseq
        %v1277 = vshrl.u32 %v1276, 7
        %v1278 = vsub.s32 0, %v1277
        %v1279 = vrot.slane %v447, %v1278
        %v1280 = vlaneseq
        %v1281 = vshrl.u32 %v1280, 7
        %v1282 = vsub.s32 0, %v1281
        %v1283 = vrot.slane %v448, %v1282
        %v1284 = vlaneseq
        %v1285 = vshrl.u32 %v1284, 7
        %v1286 = vsub.s32 0, %v1285
        %v1287 = vrot.slane %v449, %v1286
        %v1288 = vlaneseq
        %v1289 = vshrl.u32 %v1288, 7
        %v1290 = vsub.s32 0, %v1289
        %v1291 = vrot.slane %v450, %v1290
        %v1292 = vlaneseq
        %v1293 = vshrl.u32 %v1292, 7
        %v1294 = vsub.s32 0, %v1293
        %v1295 = vrot.slane %v451, %v1294
        %v1296 = vlaneseq
        %v1297 = vshrl.u32 %v1296, 7
        %v1298 = vsub.s32 0, %v1297
        %v1299 = vrot.slane %v452, %v1298
        %v1300 = vlaneseq
        %v1301 = vshrl.u32 %v1300, 7
        %v1302 = vsub.s32 0, %v1301
        %v1303 = vrot.slane %v453, %v1302
        %v1304 = vlaneseq
        %v1305 = vshrl.u32 %v1304, 7
        %v1306 = vsub.s32 0, %v1305
        %v1307 = vrot.slane %v454, %v1306
        %v1308 = vlaneseq
        %v1309 = vshrl.u32 %v1308, 7
        %v1310 = vsub.s32 0, %v1309
        %v1311 = vrot.slane %v455, %v1310
        %v1312 = vlaneseq
        %v1313 = vshrl.u32 %v1312, 7
        %v1314 = vsub.s32 0, %v1313
        %v1315 = vrot.slane %v456, %v1314
        %v1316 = vlaneseq
        %v1317 = vshrl.u32 %v1316, 7
        %v1318 = vsub.s32 0, %v1317
        %v1319 = vrot.slane %v457, %v1318
        %v1320 = vlaneseq
        %v1321 = vshrl.u32 %v1320, 7
        %v1322 = vsub.s32 0, %v1321
        %v1323 = vrot.slane %v458, %v1322
        %v1324 = vlaneseq
        %v1325 = vshrl.u32 %v1324, 7
        %v1326 = vsub.s32 0, %v1325
        %v1327 = vrot.slane %v459, %v1326
        %v1328 = vlaneseq
        %v1329 = vshrl.u32 %v1328, 7
        %v1330 = vsub.s32 0, %v1329
        %v1331 = vrot.slane %v460, %v1330
        %v1332 = vlaneseq
        %v1333 = vshrl.u32 %v1332, 7
        %v1334 = vsub.s32 0, %v1333
        %v1335 = vrot.slane %v461, %v1334
        %v1336 = vlaneseq
        %v1337 = vshrl.u32 %v1336, 7
        %v1338 = vsub.s32 0, %v1337
        %v1339 = vrot.slane %v462, %v1338
        %v1340 = vlaneseq
        %v1341 = vshrl.u32 %v1340, 7
        %v1342 = vsub.s32 0, %v1341
        %v1343 = vrot.slane %v463, %v1342
        %v1344 = vlaneseq
        %v1345 = vshrl.u32 %v1344, 7
        %v1346 = vsub.s32 0, %v1345
        %v1347 = vrot.slane %v464, %v1346
        %v1348 = vlaneseq
        %v1349 = vshrl.u32 %v1348, 7
        %v1350 = vsub.s32 0, %v1349
        %v1351 = vrot.slane %v465, %v1350
        %v1352 = vlaneseq
        %v1353 = vshrl.u32 %v1352, 7
        %v1354 = vsub.s32 0, %v1353
        %v1355 = vrot.slane %v466, %v1354
        %v1356 = vlaneseq
        %v1357 = vshrl.u32 %v1356, 7
        %v1358 = vsub.s32 0, %v1357
        %v1359 = vrot.slane %v467, %v1358
        %v1360 = vlaneseq
        %v1361 = vshrl.u32 %v1360, 7
        %v1362 = vsub.s32 0, %v1361
        %v1363 = vrot.slane %v468, %v1362
        %v1364 = vlaneseq
        %v1365 = vshrl.u32 %v1364, 7
        %v1366 = vsub.s32 0, %v1365
        %v1367 = vrot.slane %v469, %v1366
        %v1368 = vlaneseq
        %v1369 = vshrl.u32 %v1368, 7
        %v1370 = vsub.s32 0, %v1369
        %v1371 = vrot.slane %v470, %v1370
        %v1372 = vlaneseq
        %v1373 = vshrl.u32 %v1372, 7
        %v1374 = vsub.s32 0, %v1373
        %v1375 = vrot.slane %v471, %v1374
        %v1376 = vlaneseq
        %v1377 = vshrl.u32 %v1376, 7
        %v1378 = vsub.s32 0, %v1377
        %v1379 = vrot.slane %v472, %v1378
        %v1380 = vlaneseq
        %v1381 = vshrl.u32 %v1380, 7
        %v1382 = vsub.s32 0, %v1381
        %v1383 = vrot.slane %v473, %v1382
        %v1384 = vlaneseq
        %v1385 = vshrl.u32 %v1384, 7
        %v1386 = vsub.s32 0, %v1385
        %v1387 = vrot.slane %v474, %v1386
        %v1388 = vlaneseq
        %v1389 = vshrl.u32 %v1388, 7
        %v1390 = vsub.s32 0, %v1389
        %v1391 = vrot.slane %v475, %v1390
        %v1392 = vlaneseq
        %v1393 = vshrl.u32 %v1392, 7
        %v1394 = vsub.s32 0, %v1393
        %v1395 = vrot.slane %v476, %v1394
        %v1396 = vlaneseq
        %v1397 = vshrl.u32 %v1396, 7
        %v1398 = vsub.s32 0, %v1397
        %v1399 = vrot.slane %v477, %v1398
        %v1400 = vlaneseq
        %v1401 = vshrl.u32 %v1400, 7
        %v1402 = vsub.s32 0, %v1401
        %v1403 = vrot.slane %v478, %v1402
        %v1404 = vlaneseq
        %v1405 = vshrl.u32 %v1404, 7
        %v1406 = vsub.s32 0, %v1405
        %v1407 = vrot.slane %v479, %v1406
        %v1408 = vlaneseq
        %v1409 = vshrl.u32 %v1408, 7
        %v1410 = vsub.s32 0, %v1409
        %v1411 = vrot.slane %v480, %v1410
        %v1412 = vlaneseq
        %v1413 = vshrl.u32 %v1412, 7
        %v1414 = vsub.s32 0, %v1413
        %v1415 = vrot.slane %v481, %v1414
        %v1416 = vlaneseq
        %v1417 = vshrl.u32 %v1416, 7
        %v1418 = vsub.s32 0, %v1417
        %v1419 = vrot.slane %v482, %v1418
        %v1420 = vlaneseq
        %v1421 = vshrl.u32 %v1420, 7
        %v1422 = vsub.s32 0, %v1421
        %v1423 = vrot.slane %v483, %v1422
        %v1424 = vlaneseq
        %v1425 = vshrl.u32 %v1424, 7
        %v1426 = vsub.s32 0, %v1425
        %v1427 = vrot.slane %v484, %v1426
        %v1428 = vlaneseq
        %v1429 = vshrl.u32 %v1428, 7
        %v1430 = vsub.s32 0, %v1429
        %v1431 = vrot.slane %v485, %v1430
        %v1432 = vlaneseq
        %v1433 = vshrl.u32 %v1432, 7
        %v1434 = vsub.s32 0, %v1433
        %v1435 = vrot.slane %v486, %v1434
        %v1436 = vlaneseq
        %v1437 = vshrl.u32 %v1436, 7
        %v1438 = vsub.s32 0, %v1437
        %v1439 = vrot.slane %v487, %v1438
        %v1440 = vlaneseq
        %v1441 = vshrl.u32 %v1440, 7
        %v1442 = vsub.s32 0, %v1441
        %v1443 = vrot.slane %v488, %v1442
        %v1444 = vlaneseq
        %v1445 = vshrl.u32 %v1444, 7
        %v1446 = vsub.s32 0, %v1445
        %v1447 = vrot.slane %v489, %v1446
        %v1448 = vlaneseq
        %v1449 = vshrl.u32 %v1448, 7
        %v1450 = vsub.s32 0, %v1449
        %v1451 = vrot.slane %v490, %v1450
        %v1452 = vlaneseq
        %v1453 = vshrl.u32 %v1452, 7
        %v1454 = vsub.s32 0, %v1453
        %v1455 = vrot.slane %v491, %v1454
        %v1456 = vlaneseq
        %v1457 = vshrl.u32 %v1456, 7
        %v1458 = vsub.s32 0, %v1457
        %v1459 = vrot.slane %v492, %v1458
        %v1460 = vlaneseq
        %v1461 = vshrl.u32 %v1460, 7
        %v1462 = vsub.s32 0, %v1461
        %v1463 = vrot.slane %v493, %v1462
        %v1464 = vlaneseq
        %v1465 = vshrl.u32 %v1464, 7
        %v1466 = vsub.s32 0, %v1465
        %v1467 = vrot.slane %v494, %v1466
        %v1468 = vlaneseq
        %v1469 = vshrl.u32 %v1468, 7
        %v1470 = vsub.s32 0, %v1469
        %v1471 = vrot.slane %v495, %v1470
        %v1472 = vlaneseq
        %v1473 = vshrl.u32 %v1472, 7
        %v1474 = vsub.s32 0, %v1473
        %v1475 = vrot.slane %v496, %v1474
        %v1476 = vlaneseq
        %v1477 = vshrl.u32 %v1476, 7
        %v1478 = vsub.s32 0, %v1477
        %v1479 = vrot.slane %v497, %v1478
        %v1480 = vlaneseq
        %v1481 = vshrl.u32 %v1480, 7
        %v1482 = vsub.s32 0, %v1481
        %v1483 = vrot.slane %v498, %v1482
        %v1484 = vlaneseq
        %v1485 = vshrl.u32 %v1484, 7
        %v1486 = vsub.s32 0, %v1485
        %v1487 = vrot.slane %v499, %v1486
        %v1488 = vlaneseq
        %v1489 = vshrl.u32 %v1488, 7
        %v1490 = vsub.s32 0, %v1489
        %v1491 = vrot.slane %v500, %v1490
        %v1492 = vlaneseq
        %v1493 = vshrl.u32 %v1492, 7
        %v1494 = vsub.s32 0, %v1493
        %v1495 = vrot.slane %v501, %v1494
        %v1496 = vlaneseq
        %v1497 = vshrl.u32 %v1496, 7
        %v1498 = vsub.s32 0, %v1497
        %v1499 = vrot.slane %v502, %v1498
        %v1500 = vlaneseq
        %v1501 = vshrl.u32 %v1500, 7
        %v1502 = vsub.s32 0, %v1501
        %v1503 = vrot.slane %v503, %v1502
        %v1504 = vlaneseq
        %v1505 = vshrl.u32 %v1504, 7
        %v1506 = vsub.s32 0, %v1505
        %v1507 = vrot.slane %v504, %v1506
        %v1508 = vlaneseq
        %v1509 = vshrl.u32 %v1508, 7
        %v1510 = vsub.s32 0, %v1509
        %v1511 = vrot.slane %v505, %v1510
        %v1512 = vlaneseq
        %v1513 = vshrl.u32 %v1512, 7
        %v1514 = vsub.s32 0, %v1513
        %v1515 = vrot.slane %v506, %v1514
        %v1516 = vlaneseq
        %v1517 = vshrl.u32 %v1516, 7
        %v1518 = vsub.s32 0, %v1517
        %v1519 = vrot.slane %v507, %v1518
        %v1520 = vlaneseq
        %v1521 = vshrl.u32 %v1520, 7
        %v1522 = vsub.s32 0, %v1521
        %v1523 = vrot.slane %v508, %v1522
        %v1524 = vlaneseq
        %v1525 = vshrl.u32 %v1524, 7
        %v1526 = vsub.s32 0, %v1525
        %v1527 = vrot.slane %v509, %v1526
        %v1528 = vlaneseq
        %v1529 = vshrl.u32 %v1528, 7
        %v1530 = vsub.s32 0, %v1529
        %v1531 = vrot.slane %v510, %v1530
        %v1532 = vlaneseq
        %v1533 = vshrl.u32 %v1532, 7
        %v1534 = vsub.s32 0, %v1533
        %v1535 = vrot.slane %v511, %v1534
        %v1664 = vmul.f32 %v256, %v1027
        %v1665 = vmul.f32 %v257, %v1031
        %v1666 = vmul.f32 %v258, %v1035
        %v1667 = vmul.f32 %v259, %v1039
        %v1668 = vmul.f32 %v260, %v1043
        %v1669 = vmul.f32 %v261, %v1047
        %v1670 = vmul.f32 %v262, %v1051
        %v1671 = vmul.f32 %v263, %v1055
        %v1672 = vmul.f32 %v264, %v1059
        %v1673 = vmul.f32 %v265, %v1063
        %v1674 = vmul.f32 %v266, %v1067
        %v1675 = vmul.f32 %v267, %v1071
        %v1676 = vmul.f32 %v268, %v1075
        %v1677 = vmul.f32 %v269, %v1079
        %v1678 = vmul.f32 %v270, %v1083
        %v1679 = vmul.f32 %v271, %v1087
        %v1680 = vmul.f32 %v272, %v1091
        %v1681 = vmul.f32 %v273, %v1095
        %v1682 = vmul.f32 %v274, %v1099
        %v1683 = vmul.f32 %v275, %v1103
        %v1684 = vmul.f32 %v276, %v1107
        %v1685 = vmul.f32 %v277, %v1111
        %v1686 = vmul.f32 %v278, %v1115
        %v1687 = vmul.f32 %v279, %v1119
        %v1688 = vmul.f32 %v280, %v1123
        %v1689 = vmul.f32 %v281, %v1127
        %v1690 = vmul.f32 %v282, %v1131
        %v1691 = vmul.f32 %v283, %v1135
        %v1692 = vmul.f32 %v284, %v1139
        %v1693 = vmul.f32 %v285, %v1143
        %v1694 = vmul.f32 %v286, %v1147
        %v1695 = vmul.f32 %v287, %v1151
        %v1696 = vmul.f32 %v288, %v1155
        %v1697 = vmul.f32 %v289, %v1159
        %v1698 = vmul.f32 %v290, %v1163
        %v1699 = vmul.f32 %v291, %v1167
        %v1700 = vmul.f32 %v292, %v1171
        %v1701 = vmul.f32 %v293, %v1175
        %v1702 = vmul.f32 %v294, %v1179
        %v1703 = vmul.f32 %v295, %v1183
        %v1704 = vmul.f32 %v296, %v1187
        %v1705 = vmul.f32 %v297, %v1191
        %v1706 = vmul.f32 %v298, %v1195
        %v1707 = vmul.f32 %v299, %v1199
        %v1708 = vmul.f32 %v300, %v1203
        %v1709 = vmul.f32 %v301, %v1207
        %v1710 = vmul.f32 %v302, %v1211
        %v1711 = vmul.f32 %v303, %v1215
        %v1712 = vmul.f32 %v304, %v1219
        %v1713 = vmul.f32 %v305, %v1223
        %v1714 = vmul.f32 %v306, %v1227
        %v1715 = vmul.f32 %v307, %v1231
        %v1716 = vmul.f32 %v308, %v1235
        %v1717 = vmul.f32 %v309, %v1239
        %v1718 = vmul.f32 %v310, %v1243
        %v1719 = vmul.f32 %v311, %v1247
        %v1720 = vmul.f32 %v312, %v1251
        %v1721 = vmul.f32 %v313, %v1255
        %v1722 = vmul.f32 %v314, %v1259
        %v1723 = vmul.f32 %v315, %v1263
        %v1724 = vmul.f32 %v316, %v1267
        %v1725 = vmul.f32 %v317, %v1271
        %v1726 = vmul.f32 %v318, %v1275
        %v1727 = vmul.f32 %v319, %v1279
        %v1728 = vmul.f32 %v320, %v1283
        %v1729 = vmul.f32 %v321, %v1287
        %v1730 = vmul.f32 %v322, %v1291
        %v1731 = vmul.f32 %v323, %v1295
        %v1732 = vmul.f32 %v324, %v1299
        %v1733 = vmul.f32 %v325, %v1303
        %v1734 = vmul.f32 %v326, %v1307
        %v1735 = vmul.f32 %v327, %v1311
        %v1736 = vmul.f32 %v328, %v1315
        %v1737 = vmul.f32 %v329, %v1319
        %v1738 = vmul.f32 %v330, %v1323
        %v1739 = vmul.f32 %v331, %v1327
        %v1740 = vmul.f32 %v332, %v1331
        %v1741 = vmul.f32 %v333, %v1335
        %v1742 = vmul.f32 %v334, %v1339
        %v1743 = vmul.f32 %v335, %v1343
        %v1744 = vmul.f32 %v336, %v1347
        %v1745 = vmul.f32 %v337, %v1351
        %v1746 = vmul.f32 %v338, %v1355
        %v1747 = vmul.f32 %v339, %v1359
        %v1748 = vmul.f32 %v340, %v1363
        %v1749 = vmul.f32 %v341, %v1367
        %v1750 = vmul.f32 %v342, %v1371
        %v1751 = vmul.f32 %v343, %v1375
        %v1752 = vmul.f32 %v344, %v1379
        %v1753 = vmul.f32 %v345, %v1383
        %v1754 = vmul.f32 %v346, %v1387
        %v1755 = vmul.f32 %v347, %v1391
        %v1756 = vmul.f32 %v348, %v1395
        %v1757 = vmul.f32 %v349, %v1399
        %v1758 = vmul.f32 %v350, %v1403
        %v1759 = vmul.f32 %v351, %v1407
        %v1760 = vmul.f32 %v352, %v1411
        %v1761 = vmul.f32 %v353, %v1415
        %v1762 = vmul.f32 %v354, %v1419
        %v1763 = vmul.f32 %v355, %v1423
        %v1764 = vmul.f32 %v356, %v1427
        %v1765 = vmul.f32 %v357, %v1431
        %v1766 = vmul.f32 %v358, %v1435
        %v1767 = vmul.f32 %v359, %v1439
        %v1768 = vmul.f32 %v360, %v1443
        %v1769 = vmul.f32 %v361, %v1447
        %v1770 = vmul.f32 %v362, %v1451
        %v1771 = vmul.f32 %v363, %v1455
        %v1772 = vmul.f32 %v364, %v1459
        %v1773 = vmul.f32 %v365, %v1463
        %v1774 = vmul.f32 %v366, %v1467
        %v1775 = vmul.f32 %v367, %v1471
        %v1776 = vmul.f32 %v368, %v1475
        %v1777 = vmul.f32 %v369, %v1479
        %v1778 = vmul.f32 %v370, %v1483
        %v1779 = vmul.f32 %v371, %v1487
        %v1780 = vmul.f32 %v372, %v1491
        %v1781 = vmul.f32 %v373, %v1495
        %v1782 = vmul.f32 %v374, %v1499
        %v1783 = vmul.f32 %v375, %v1503
        %v1784 = vmul.f32 %v376, %v1507
        %v1785 = vmul.f32 %v377, %v1511
        %v1786 = vmul.f32 %v378, %v1515
        %v1787 = vmul.f32 %v379, %v1519
        %v1788 = vmul.f32 %v380, %v1523
        %v1789 = vmul.f32 %v381, %v1527
        %v1790 = vmul.f32 %v382, %v1531
        %v1791 = vmul.f32 %v383, %v1535
        %v1920 = vlaneseq
        %v1921 = vshrl.u32 %v1920, 7
        %v1922 = vsub.s32 0, %v1921
        %v1923 = vrot.slane %v512, %v1922
        %v1924 = vlaneseq
        %v1925 = vshrl.u32 %v1924, 7
        %v1926 = vsub.s32 0, %v1925
        %v1927 = vrot.slane %v513, %v1926
        %v1928 = vlaneseq
        %v1929 = vshrl.u32 %v1928, 7
        %v1930 = vsub.s32 0, %v1929
        %v1931 = vrot.slane %v514, %v1930
        %v1932 = vlaneseq
        %v1933 = vshrl.u32 %v1932, 7
        %v1934 = vsub.s32 0, %v1933
        %v1935 = vrot.slane %v515, %v1934
        %v1936 = vlaneseq
        %v1937 = vshrl.u32 %v1936, 7
        %v1938 = vsub.s32 0, %v1937
        %v1939 = vrot.slane %v516, %v1938
        %v1940 = vlaneseq
        %v1941 = vshrl.u32 %v1940, 7
        %v1942 = vsub.s32 0, %v1941
        %v1943 = vrot.slane %v517, %v1942
        %v1944 = vlaneseq
        %v1945 = vshrl.u32 %v1944, 7
        %v1946 = vsub.s32 0, %v1945
        %v1947 = vrot.slane %v518, %v1946
        %v1948 = vlaneseq
        %v1949 = vshrl.u32 %v1948, 7
        %v1950 = vsub.s32 0, %v1949
        %v1951 = vrot.slane %v519, %v1950
        %v1952 = vlaneseq
        %v1953 = vshrl.u32 %v1952, 7
        %v1954 = vsub.s32 0, %v1953
        %v1955 = vrot.slane %v520, %v1954
        %v1956 = vlaneseq
        %v1957 = vshrl.u32 %v1956, 7
        %v1958 = vsub.s32 0, %v1957
        %v1959 = vrot.slane %v521, %v1958
        %v1960 = vlaneseq
        %v1961 = vshrl.u32 %v1960, 7
        %v1962 = vsub.s32 0, %v1961
        %v1963 = vrot.slane %v522, %v1962
        %v1964 = vlaneseq
        %v1965 = vshrl.u32 %v1964, 7
        %v1966 = vsub.s32 0, %v1965
        %v1967 = vrot.slane %v523, %v1966
        %v1968 = vlaneseq
        %v1969 = vshrl.u32 %v1968, 7
        %v1970 = vsub.s32 0, %v1969
        %v1971 = vrot.slane %v524, %v1970
        %v1972 = vlaneseq
        %v1973 = vshrl.u32 %v1972, 7
        %v1974 = vsub.s32 0, %v1973
        %v1975 = vrot.slane %v525, %v1974
        %v1976 = vlaneseq
        %v1977 = vshrl.u32 %v1976, 7
        %v1978 = vsub.s32 0, %v1977
        %v1979 = vrot.slane %v526, %v1978
        %v1980 = vlaneseq
        %v1981 = vshrl.u32 %v1980, 7
        %v1982 = vsub.s32 0, %v1981
        %v1983 = vrot.slane %v527, %v1982
        %v1984 = vlaneseq
        %v1985 = vshrl.u32 %v1984, 7
        %v1986 = vsub.s32 0, %v1985
        %v1987 = vrot.slane %v528, %v1986
        %v1988 = vlaneseq
        %v1989 = vshrl.u32 %v1988, 7
        %v1990 = vsub.s32 0, %v1989
        %v1991 = vrot.slane %v529, %v1990
        %v1992 = vlaneseq
        %v1993 = vshrl.u32 %v1992, 7
        %v1994 = vsub.s32 0, %v1993
        %v1995 = vrot.slane %v530, %v1994
        %v1996 = vlaneseq
        %v1997 = vshrl.u32 %v1996, 7
        %v1998 = vsub.s32 0, %v1997
        %v1999 = vrot.slane %v531, %v1998
        %v2000 = vlaneseq
        %v2001 = vshrl.u32 %v2000, 7
        %v2002 = vsub.s32 0, %v2001
        %v2003 = vrot.slane %v532, %v2002
        %v2004 = vlaneseq
        %v2005 = vshrl.u32 %v2004, 7
        %v2006 = vsub.s32 0, %v2005
        %v2007 = vrot.slane %v533, %v2006
        %v2008 = vlaneseq
        %v2009 = vshrl.u32 %v2008, 7
        %v2010 = vsub.s32 0, %v2009
        %v2011 = vrot.slane %v534, %v2010
        %v2012 = vlaneseq
        %v2013 = vshrl.u32 %v2012, 7
        %v2014 = vsub.s32 0, %v2013
        %v2015 = vrot.slane %v535, %v2014
        %v2016 = vlaneseq
        %v2017 = vshrl.u32 %v2016, 7
        %v2018 = vsub.s32 0, %v2017
        %v2019 = vrot.slane %v536, %v2018
        %v2020 = vlaneseq
        %v2021 = vshrl.u32 %v2020, 7
        %v2022 = vsub.s32 0, %v2021
        %v2023 = vrot.slane %v537, %v2022
        %v2024 = vlaneseq
        %v2025 = vshrl.u32 %v2024, 7
        %v2026 = vsub.s32 0, %v2025
        %v2027 = vrot.slane %v538, %v2026
        %v2028 = vlaneseq
        %v2029 = vshrl.u32 %v2028, 7
        %v2030 = vsub.s32 0, %v2029
        %v2031 = vrot.slane %v539, %v2030
        %v2032 = vlaneseq
        %v2033 = vshrl.u32 %v2032, 7
        %v2034 = vsub.s32 0, %v2033
        %v2035 = vrot.slane %v540, %v2034
        %v2036 = vlaneseq
        %v2037 = vshrl.u32 %v2036, 7
        %v2038 = vsub.s32 0, %v2037
        %v2039 = vrot.slane %v541, %v2038
        %v2040 = vlaneseq
        %v2041 = vshrl.u32 %v2040, 7
        %v2042 = vsub.s32 0, %v2041
        %v2043 = vrot.slane %v542, %v2042
        %v2044 = vlaneseq
        %v2045 = vshrl.u32 %v2044, 7
        %v2046 = vsub.s32 0, %v2045
        %v2047 = vrot.slane %v543, %v2046
        %v2048 = vlaneseq
        %v2049 = vshrl.u32 %v2048, 7
        %v2050 = vsub.s32 0, %v2049
        %v2051 = vrot.slane %v544, %v2050
        %v2052 = vlaneseq
        %v2053 = vshrl.u32 %v2052, 7
        %v2054 = vsub.s32 0, %v2053
        %v2055 = vrot.slane %v545, %v2054
        %v2056 = vlaneseq
        %v2057 = vshrl.u32 %v2056, 7
        %v2058 = vsub.s32 0, %v2057
        %v2059 = vrot.slane %v546, %v2058
        %v2060 = vlaneseq
        %v2061 = vshrl.u32 %v2060, 7
        %v2062 = vsub.s32 0, %v2061
        %v2063 = vrot.slane %v547, %v2062
        %v2064 = vlaneseq
        %v2065 = vshrl.u32 %v2064, 7
        %v2066 = vsub.s32 0, %v2065
        %v2067 = vrot.slane %v548, %v2066
        %v2068 = vlaneseq
        %v2069 = vshrl.u32 %v2068, 7
        %v2070 = vsub.s32 0, %v2069
        %v2071 = vrot.slane %v549, %v2070
        %v2072 = vlaneseq
        %v2073 = vshrl.u32 %v2072, 7
        %v2074 = vsub.s32 0, %v2073
        %v2075 = vrot.slane %v550, %v2074
        %v2076 = vlaneseq
        %v2077 = vshrl.u32 %v2076, 7
        %v2078 = vsub.s32 0, %v2077
        %v2079 = vrot.slane %v551, %v2078
        %v2080 = vlaneseq
        %v2081 = vshrl.u32 %v2080, 7
        %v2082 = vsub.s32 0, %v2081
        %v2083 = vrot.slane %v552, %v2082
        %v2084 = vlaneseq
        %v2085 = vshrl.u32 %v2084, 7
        %v2086 = vsub.s32 0, %v2085
        %v2087 = vrot.slane %v553, %v2086
        %v2088 = vlaneseq
        %v2089 = vshrl.u32 %v2088, 7
        %v2090 = vsub.s32 0, %v2089
        %v2091 = vrot.slane %v554, %v2090
        %v2092 = vlaneseq
        %v2093 = vshrl.u32 %v2092, 7
        %v2094 = vsub.s32 0, %v2093
        %v2095 = vrot.slane %v555, %v2094
        %v2096 = vlaneseq
        %v2097 = vshrl.u32 %v2096, 7
        %v2098 = vsub.s32 0, %v2097
        %v2099 = vrot.slane %v556, %v2098
        %v2100 = vlaneseq
        %v2101 = vshrl.u32 %v2100, 7
        %v2102 = vsub.s32 0, %v2101
        %v2103 = vrot.slane %v557, %v2102
        %v2104 = vlaneseq
        %v2105 = vshrl.u32 %v2104, 7
        %v2106 = vsub.s32 0, %v2105
        %v2107 = vrot.slane %v558, %v2106
        %v2108 = vlaneseq
        %v2109 = vshrl.u32 %v2108, 7
        %v2110 = vsub.s32 0, %v2109
        %v2111 = vrot.slane %v559, %v2110
        %v2112 = vlaneseq
        %v2113 = vshrl.u32 %v2112, 7
        %v2114 = vsub.s32 0, %v2113
        %v2115 = vrot.slane %v560, %v2114
        %v2116 = vlaneseq
        %v2117 = vshrl.u32 %v2116, 7
        %v2118 = vsub.s32 0, %v2117
        %v2119 = vrot.slane %v561, %v2118
        %v2120 = vlaneseq
        %v2121 = vshrl.u32 %v2120, 7
        %v2122 = vsub.s32 0, %v2121
        %v2123 = vrot.slane %v562, %v2122
        %v2124 = vlaneseq
        %v2125 = vshrl.u32 %v2124, 7
        %v2126 = vsub.s32 0, %v2125
        %v2127 = vrot.slane %v563, %v2126
        %v2128 = vlaneseq
        %v2129 = vshrl.u32 %v2128, 7
        %v2130 = vsub.s32 0, %v2129
        %v2131 = vrot.slane %v564, %v2130
        %v2132 = vlaneseq
        %v2133 = vshrl.u32 %v2132, 7
        %v2134 = vsub.s32 0, %v2133
        %v2135 = vrot.slane %v565, %v2134
        %v2136 = vlaneseq
        %v2137 = vshrl.u32 %v2136, 7
        %v2138 = vsub.s32 0, %v2137
        %v2139 = vrot.slane %v566, %v2138
        %v2140 = vlaneseq
        %v2141 = vshrl.u32 %v2140, 7
        %v2142 = vsub.s32 0, %v2141
        %v2143 = vrot.slane %v567, %v2142
        %v2144 = vlaneseq
        %v2145 = vshrl.u32 %v2144, 7
        %v2146 = vsub.s32 0, %v2145
        %v2147 = vrot.slane %v568, %v2146
        %v2148 = vlaneseq
        %v2149 = vshrl.u32 %v2148, 7
        %v2150 = vsub.s32 0, %v2149
        %v2151 = vrot.slane %v569, %v2150
        %v2152 = vlaneseq
        %v2153 = vshrl.u32 %v2152, 7
        %v2154 = vsub.s32 0, %v2153
        %v2155 = vrot.slane %v570, %v2154
        %v2156 = vlaneseq
        %v2157 = vshrl.u32 %v2156, 7
        %v2158 = vsub.s32 0, %v2157
        %v2159 = vrot.slane %v571, %v2158
        %v2160 = vlaneseq
        %v2161 = vshrl.u32 %v2160, 7
        %v2162 = vsub.s32 0, %v2161
        %v2163 = vrot.slane %v572, %v2162
        %v2164 = vlaneseq
        %v2165 = vshrl.u32 %v2164, 7
        %v2166 = vsub.s32 0, %v2165
        %v2167 = vrot.slane %v573, %v2166
        %v2168 = vlaneseq
        %v2169 = vshrl.u32 %v2168, 7
        %v2170 = vsub.s32 0, %v2169
        %v2171 = vrot.slane %v574, %v2170
        %v2172 = vlaneseq
        %v2173 = vshrl.u32 %v2172, 7
        %v2174 = vsub.s32 0, %v2173
        %v2175 = vrot.slane %v575, %v2174
        %v2176 = vlaneseq
        %v2177 = vshrl.u32 %v2176, 7
        %v2178 = vsub.s32 0, %v2177
        %v2179 = vrot.slane %v576, %v2178
        %v2180 = vlaneseq
        %v2181 = vshrl.u32 %v2180, 7
        %v2182 = vsub.s32 0, %v2181
        %v2183 = vrot.slane %v577, %v2182
        %v2184 = vlaneseq
        %v2185 = vshrl.u32 %v2184, 7
        %v2186 = vsub.s32 0, %v2185
        %v2187 = vrot.slane %v578, %v2186
        %v2188 = vlaneseq
        %v2189 = vshrl.u32 %v2188, 7
        %v2190 = vsub.s32 0, %v2189
        %v2191 = vrot.slane %v579, %v2190
        %v2192 = vlaneseq
        %v2193 = vshrl.u32 %v2192, 7
        %v2194 = vsub.s32 0, %v2193
        %v2195 = vrot.slane %v580, %v2194
        %v2196 = vlaneseq
        %v2197 = vshrl.u32 %v2196, 7
        %v2198 = vsub.s32 0, %v2197
        %v2199 = vrot.slane %v581, %v2198
        %v2200 = vlaneseq
        %v2201 = vshrl.u32 %v2200, 7
        %v2202 = vsub.s32 0, %v2201
        %v2203 = vrot.slane %v582, %v2202
        %v2204 = vlaneseq
        %v2205 = vshrl.u32 %v2204, 7
        %v2206 = vsub.s32 0, %v2205
        %v2207 = vrot.slane %v583, %v2206
        %v2208 = vlaneseq
        %v2209 = vshrl.u32 %v2208, 7
        %v2210 = vsub.s32 0, %v2209
        %v2211 = vrot.slane %v584, %v2210
        %v2212 = vlaneseq
        %v2213 = vshrl.u32 %v2212, 7
        %v2214 = vsub.s32 0, %v2213
        %v2215 = vrot.slane %v585, %v2214
        %v2216 = vlaneseq
        %v2217 = vshrl.u32 %v2216, 7
        %v2218 = vsub.s32 0, %v2217
        %v2219 = vrot.slane %v586, %v2218
        %v2220 = vlaneseq
        %v2221 = vshrl.u32 %v2220, 7
        %v2222 = vsub.s32 0, %v2221
        %v2223 = vrot.slane %v587, %v2222
        %v2224 = vlaneseq
        %v2225 = vshrl.u32 %v2224, 7
        %v2226 = vsub.s32 0, %v2225
        %v2227 = vrot.slane %v588, %v2226
        %v2228 = vlaneseq
        %v2229 = vshrl.u32 %v2228, 7
        %v2230 = vsub.s32 0, %v2229
        %v2231 = vrot.slane %v589, %v2230
        %v2232 = vlaneseq
        %v2233 = vshrl.u32 %v2232, 7
        %v2234 = vsub.s32 0, %v2233
        %v2235 = vrot.slane %v590, %v2234
        %v2236 = vlaneseq
        %v2237 = vshrl.u32 %v2236, 7
        %v2238 = vsub.s32 0, %v2237
        %v2239 = vrot.slane %v591, %v2238
        %v2240 = vlaneseq
        %v2241 = vshrl.u32 %v2240, 7
        %v2242 = vsub.s32 0, %v2241
        %v2243 = vrot.slane %v592, %v2242
        %v2244 = vlaneseq
        %v2245 = vshrl.u32 %v2244, 7
        %v2246 = vsub.s32 0, %v2245
        %v2247 = vrot.slane %v593, %v2246
        %v2248 = vlaneseq
        %v2249 = vshrl.u32 %v2248, 7
        %v2250 = vsub.s32 0, %v2249
        %v2251 = vrot.slane %v594, %v2250
        %v2252 = vlaneseq
        %v2253 = vshrl.u32 %v2252, 7
        %v2254 = vsub.s32 0, %v2253
        %v2255 = vrot.slane %v595, %v2254
        %v2256 = vlaneseq
        %v2257 = vshrl.u32 %v2256, 7
        %v2258 = vsub.s32 0, %v2257
        %v2259 = vrot.slane %v596, %v2258
        %v2260 = vlaneseq
        %v2261 = vshrl.u32 %v2260, 7
        %v2262 = vsub.s32 0, %v2261
        %v2263 = vrot.slane %v597, %v2262
        %v2264 = vlaneseq
        %v2265 = vshrl.u32 %v2264, 7
        %v2266 = vsub.s32 0, %v2265
        %v2267 = vrot.slane %v598, %v2266
        %v2268 = vlaneseq
        %v2269 = vshrl.u32 %v2268, 7
        %v2270 = vsub.s32 0, %v2269
        %v2271 = vrot.slane %v599, %v2270
        %v2272 = vlaneseq
        %v2273 = vshrl.u32 %v2272, 7
        %v2274 = vsub.s32 0, %v2273
        %v2275 = vrot.slane %v600, %v2274
        %v2276 = vlaneseq
        %v2277 = vshrl.u32 %v2276, 7
        %v2278 = vsub.s32 0, %v2277
        %v2279 = vrot.slane %v601, %v2278
        %v2280 = vlaneseq
        %v2281 = vshrl.u32 %v2280, 7
        %v2282 = vsub.s32 0, %v2281
        %v2283 = vrot.slane %v602, %v2282
        %v2284 = vlaneseq
        %v2285 = vshrl.u32 %v2284, 7
        %v2286 = vsub.s32 0, %v2285
        %v2287 = vrot.slane %v603, %v2286
        %v2288 = vlaneseq
        %v2289 = vshrl.u32 %v2288, 7
        %v2290 = vsub.s32 0, %v2289
        %v2291 = vrot.slane %v604, %v2290
        %v2292 = vlaneseq
        %v2293 = vshrl.u32 %v2292, 7
        %v2294 = vsub.s32 0, %v2293
        %v2295 = vrot.slane %v605, %v2294
        %v2296 = vlaneseq
        %v2297 = vshrl.u32 %v2296, 7
        %v2298 = vsub.s32 0, %v2297
        %v2299 = vrot.slane %v606, %v2298
        %v2300 = vlaneseq
        %v2301 = vshrl.u32 %v2300, 7
        %v2302 = vsub.s32 0, %v2301
        %v2303 = vrot.slane %v607, %v2302
        %v2304 = vlaneseq
        %v2305 = vshrl.u32 %v2304, 7
        %v2306 = vsub.s32 0, %v2305
        %v2307 = vrot.slane %v608, %v2306
        %v2308 = vlaneseq
        %v2309 = vshrl.u32 %v2308, 7
        %v2310 = vsub.s32 0, %v2309
        %v2311 = vrot.slane %v609, %v2310
        %v2312 = vlaneseq
        %v2313 = vshrl.u32 %v2312, 7
        %v2314 = vsub.s32 0, %v2313
        %v2315 = vrot.slane %v610, %v2314
        %v2316 = vlaneseq
        %v2317 = vshrl.u32 %v2316, 7
        %v2318 = vsub.s32 0, %v2317
        %v2319 = vrot.slane %v611, %v2318
        %v2320 = vlaneseq
        %v2321 = vshrl.u32 %v2320, 7
        %v2322 = vsub.s32 0, %v2321
        %v2323 = vrot.slane %v612, %v2322
        %v2324 = vlaneseq
        %v2325 = vshrl.u32 %v2324, 7
        %v2326 = vsub.s32 0, %v2325
        %v2327 = vrot.slane %v613, %v2326
        %v2328 = vlaneseq
        %v2329 = vshrl.u32 %v2328, 7
        %v2330 = vsub.s32 0, %v2329
        %v2331 = vrot.slane %v614, %v2330
        %v2332 = vlaneseq
        %v2333 = vshrl.u32 %v2332, 7
        %v2334 = vsub.s32 0, %v2333
        %v2335 = vrot.slane %v615, %v2334
        %v2336 = vlaneseq
        %v2337 = vshrl.u32 %v2336, 7
        %v2338 = vsub.s32 0, %v2337
        %v2339 = vrot.slane %v616, %v2338
        %v2340 = vlaneseq
        %v2341 = vshrl.u32 %v2340, 7
        %v2342 = vsub.s32 0, %v2341
        %v2343 = vrot.slane %v617, %v2342
        %v2344 = vlaneseq
        %v2345 = vshrl.u32 %v2344, 7
        %v2346 = vsub.s32 0, %v2345
        %v2347 = vrot.slane %v618, %v2346
        %v2348 = vlaneseq
        %v2349 = vshrl.u32 %v2348, 7
        %v2350 = vsub.s32 0, %v2349
        %v2351 = vrot.slane %v619, %v2350
        %v2352 = vlaneseq
        %v2353 = vshrl.u32 %v2352, 7
        %v2354 = vsub.s32 0, %v2353
        %v2355 = vrot.slane %v620, %v2354
        %v2356 = vlaneseq
        %v2357 = vshrl.u32 %v2356, 7
        %v2358 = vsub.s32 0, %v2357
        %v2359 = vrot.slane %v621, %v2358
        %v2360 = vlaneseq
        %v2361 = vshrl.u32 %v2360, 7
        %v2362 = vsub.s32 0, %v2361
        %v2363 = vrot.slane %v622, %v2362
        %v2364 = vlaneseq
        %v2365 = vshrl.u32 %v2364, 7
        %v2366 = vsub.s32 0, %v2365
        %v2367 = vrot.slane %v623, %v2366
        %v2368 = vlaneseq
        %v2369 = vshrl.u32 %v2368, 7
        %v2370 = vsub.s32 0, %v2369
        %v2371 = vrot.slane %v624, %v2370
        %v2372 = vlaneseq
        %v2373 = vshrl.u32 %v2372, 7
        %v2374 = vsub.s32 0, %v2373
        %v2375 = vrot.slane %v625, %v2374
        %v2376 = vlaneseq
        %v2377 = vshrl.u32 %v2376, 7
        %v2378 = vsub.s32 0, %v2377
        %v2379 = vrot.slane %v626, %v2378
        %v2380 = vlaneseq
        %v2381 = vshrl.u32 %v2380, 7
        %v2382 = vsub.s32 0, %v2381
        %v2383 = vrot.slane %v627, %v2382
        %v2384 = vlaneseq
        %v2385 = vshrl.u32 %v2384, 7
        %v2386 = vsub.s32 0, %v2385
        %v2387 = vrot.slane %v628, %v2386
        %v2388 = vlaneseq
        %v2389 = vshrl.u32 %v2388, 7
        %v2390 = vsub.s32 0, %v2389
        %v2391 = vrot.slane %v629, %v2390
        %v2392 = vlaneseq
        %v2393 = vshrl.u32 %v2392, 7
        %v2394 = vsub.s32 0, %v2393
        %v2395 = vrot.slane %v630, %v2394
        %v2396 = vlaneseq
        %v2397 = vshrl.u32 %v2396, 7
        %v2398 = vsub.s32 0, %v2397
        %v2399 = vrot.slane %v631, %v2398
        %v2400 = vlaneseq
        %v2401 = vshrl.u32 %v2400, 7
        %v2402 = vsub.s32 0, %v2401
        %v2403 = vrot.slane %v632, %v2402
        %v2404 = vlaneseq
        %v2405 = vshrl.u32 %v2404, 7
        %v2406 = vsub.s32 0, %v2405
        %v2407 = vrot.slane %v633, %v2406
        %v2408 = vlaneseq
        %v2409 = vshrl.u32 %v2408, 7
        %v2410 = vsub.s32 0, %v2409
        %v2411 = vrot.slane %v634, %v2410
        %v2412 = vlaneseq
        %v2413 = vshrl.u32 %v2412, 7
        %v2414 = vsub.s32 0, %v2413
        %v2415 = vrot.slane %v635, %v2414
        %v2416 = vlaneseq
        %v2417 = vshrl.u32 %v2416, 7
        %v2418 = vsub.s32 0, %v2417
        %v2419 = vrot.slane %v636, %v2418
        %v2420 = vlaneseq
        %v2421 = vshrl.u32 %v2420, 7
        %v2422 = vsub.s32 0, %v2421
        %v2423 = vrot.slane %v637, %v2422
        %v2424 = vlaneseq
        %v2425 = vshrl.u32 %v2424, 7
        %v2426 = vsub.s32 0, %v2425
        %v2427 = vrot.slane %v638, %v2426
        %v2428 = vlaneseq
        %v2429 = vshrl.u32 %v2428, 7
        %v2430 = vsub.s32 0, %v2429
        %v2431 = vrot.slane %v639, %v2430
        %v2560 = vmul.f32 %v641, %v1923
        %v2561 = vmul.f32 %v643, %v1927
        %v2562 = vmul.f32 %v645, %v1931
        %v2563 = vmul.f32 %v647, %v1935
        %v2564 = vmul.f32 %v649, %v1939
        %v2565 = vmul.f32 %v651, %v1943
        %v2566 = vmul.f32 %v653, %v1947
        %v2567 = vmul.f32 %v655, %v1951
        %v2568 = vmul.f32 %v657, %v1955
        %v2569 = vmul.f32 %v659, %v1959
        %v2570 = vmul.f32 %v661, %v1963
        %v2571 = vmul.f32 %v663, %v1967
        %v2572 = vmul.f32 %v665, %v1971
        %v2573 = vmul.f32 %v667, %v1975
        %v2574 = vmul.f32 %v669, %v1979
        %v2575 = vmul.f32 %v671, %v1983
        %v2576 = vmul.f32 %v673, %v1987
        %v2577 = vmul.f32 %v675, %v1991
        %v2578 = vmul.f32 %v677, %v1995
        %v2579 = vmul.f32 %v679, %v1999
        %v2580 = vmul.f32 %v681, %v2003
        %v2581 = vmul.f32 %v683, %v2007
        %v2582 = vmul.f32 %v685, %v2011
        %v2583 = vmul.f32 %v687, %v2015
        %v2584 = vmul.f32 %v689, %v2019
        %v2585 = vmul.f32 %v691, %v2023
        %v2586 = vmul.f32 %v693, %v2027
        %v2587 = vmul.f32 %v695, %v2031
        %v2588 = vmul.f32 %v697, %v2035
        %v2589 = vmul.f32 %v699, %v2039
        %v2590 = vmul.f32 %v701, %v2043
        %v2591 = vmul.f32 %v703, %v2047
        %v2592 = vmul.f32 %v705, %v2051
        %v2593 = vmul.f32 %v707, %v2055
        %v2594 = vmul.f32 %v709, %v2059
        %v2595 = vmul.f32 %v711, %v2063
        %v2596 = vmul.f32 %v713, %v2067
        %v2597 = vmul.f32 %v715, %v2071
        %v2598 = vmul.f32 %v717, %v2075
        %v2599 = vmul.f32 %v719, %v2079
        %v2600 = vmul.f32 %v721, %v2083
        %v2601 = vmul.f32 %v723, %v2087
        %v2602 = vmul.f32 %v725, %v2091
        %v2603 = vmul.f32 %v727, %v2095
        %v2604 = vmul.f32 %v729, %v2099
        %v2605 = vmul.f32 %v731, %v2103
        %v2606 = vmul.f32 %v733, %v2107
        %v2607 = vmul.f32 %v735, %v2111
        %v2608 = vmul.f32 %v737, %v2115
        %v2609 = vmul.f32 %v739, %v2119
        %v2610 = vmul.f32 %v741, %v2123
        %v2611 = vmul.f32 %v743, %v2127
        %v2612 = vmul.f32 %v745, %v2131
        %v2613 = vmul.f32 %v747, %v2135
        %v2614 = vmul.f32 %v749, %v2139
        %v2615 = vmul.f32 %v751, %v2143
        %v2616 = vmul.f32 %v753, %v2147
        %v2617 = vmul.f32 %v755, %v2151
        %v2618 = vmul.f32 %v757, %v2155
        %v2619 = vmul.f32 %v759, %v2159
        %v2620 = vmul.f32 %v761, %v2163
        %v2621 = vmul.f32 %v763, %v2167
        %v2622 = vmul.f32 %v765, %v2171
        %v2623 = vmul.f32 %v767, %v2175
        %v2624 = vmul.f32 %v769, %v2179
        %v2625 = vmul.f32 %v771, %v2183
        %v2626 = vmul.f32 %v773, %v2187
        %v2627 = vmul.f32 %v775, %v2191
        %v2628 = vmul.f32 %v777, %v2195
        %v2629 = vmul.f32 %v779, %v2199
        %v2630 = vmul.f32 %v781, %v2203
        %v2631 = vmul.f32 %v783, %v2207
        %v2632 = vmul.f32 %v785, %v2211
        %v2633 = vmul.f32 %v787, %v2215
        %v2634 = vmul.f32 %v789, %v2219
        %v2635 = vmul.f32 %v791, %v2223
        %v2636 = vmul.f32 %v793, %v2227
        %v2637 = vmul.f32 %v795, %v2231
        %v2638 = vmul.f32 %v797, %v2235
        %v2639 = vmul.f32 %v799, %v2239
        %v2640 = vmul.f32 %v801, %v2243
        %v2641 = vmul.f32 %v803, %v2247
        %v2642 = vmul.f32 %v805, %v2251
        %v2643 = vmul.f32 %v807, %v2255
        %v2644 = vmul.f32 %v809, %v2259
        %v2645 = vmul.f32 %v811, %v2263
        %v2646 = vmul.f32 %v813, %v2267
        %v2647 = vmul.f32 %v815, %v2271
        %v2648 = vmul.f32 %v817, %v2275
        %v2649 = vmul.f32 %v819, %v2279
        %v2650 = vmul.f32 %v821, %v2283
        %v2651 = vmul.f32 %v823, %v2287
        %v2652 = vmul.f32 %v825, %v2291
        %v2653 = vmul.f32 %v827, %v2295
        %v2654 = vmul.f32 %v829, %v2299
        %v2655 = vmul.f32 %v831, %v2303
        %v2656 = vmul.f32 %v833, %v2307
        %v2657 = vmul.f32 %v835, %v2311
        %v2658 = vmul.f32 %v837, %v2315
        %v2659 = vmul.f32 %v839, %v2319
        %v2660 = vmul.f32 %v841, %v2323
        %v2661 = vmul.f32 %v843, %v2327
        %v2662 = vmul.f32 %v845, %v2331
        %v2663 = vmul.f32 %v847, %v2335
        %v2664 = vmul.f32 %v849, %v2339
        %v2665 = vmul.f32 %v851, %v2343
        %v2666 = vmul.f32 %v853, %v2347
        %v2667 = vmul.f32 %v855, %v2351
        %v2668 = vmul.f32 %v857, %v2355
        %v2669 = vmul.f32 %v859, %v2359
        %v2670 = vmul.f32 %v861, %v2363
        %v2671 = vmul.f32 %v863, %v2367
        %v2672 = vmul.f32 %v865, %v2371
        %v2673 = vmul.f32 %v867, %v2375
        %v2674 = vmul.f32 %v869, %v2379
        %v2675 = vmul.f32 %v871, %v2383
        %v2676 = vmul.f32 %v873, %v2387
        %v2677 = vmul.f32 %v875, %v2391
        %v2678 = vmul.f32 %v877, %v2395
        %v2679 = vmul.f32 %v879, %v2399
        %v2680 = vmul.f32 %v881, %v2403
        %v2681 = vmul.f32 %v883, %v2407
        %v2682 = vmul.f32 %v885, %v2411
        %v2683 = vmul.f32 %v887, %v2415
        %v2684 = vmul.f32 %v889, %v2419
        %v2685 = vmul.f32 %v891, %v2423
        %v2686 = vmul.f32 %v893, %v2427
        %v2687 = vmul.f32 %v895, %v2431
        %v2688 = vadd.f32 %v1664, %v2560
        %v2689 = vadd.f32 %v1665, %v2561
        %v2690 = vadd.f32 %v1666, %v2562
        %v2691 = vadd.f32 %v1667, %v2563
        %v2692 = vadd.f32 %v1668, %v2564
        %v2693 = vadd.f32 %v1669, %v2565
        %v2694 = vadd.f32 %v1670, %v2566
        %v2695 = vadd.f32 %v1671, %v2567
        %v2696 = vadd.f32 %v1672, %v2568
        %v2697 = vadd.f32 %v1673, %v2569
        %v2698 = vadd.f32 %v1674, %v2570
        %v2699 = vadd.f32 %v1675, %v2571
        %v2700 = vadd.f32 %v1676, %v2572
        %v2701 = vadd.f32 %v1677, %v2573
        %v2702 = vadd.f32 %v1678, %v2574
        %v2703 = vadd.f32 %v1679, %v2575
        %v2704 = vadd.f32 %v1680, %v2576
        %v2705 = vadd.f32 %v1681, %v2577
        %v2706 = vadd.f32 %v1682, %v2578
        %v2707 = vadd.f32 %v1683, %v2579
        %v2708 = vadd.f32 %v1684, %v2580
        %v2709 = vadd.f32 %v1685, %v2581
        %v2710 = vadd.f32 %v1686, %v2582
        %v2711 = vadd.f32 %v1687, %v2583
        %v2712 = vadd.f32 %v1688, %v2584
        %v2713 = vadd.f32 %v1689, %v2585
        %v2714 = vadd.f32 %v1690, %v2586
        %v2715 = vadd.f32 %v1691, %v2587
        %v2716 = vadd.f32 %v1692, %v2588
        %v2717 = vadd.f32 %v1693, %v2589
        %v2718 = vadd.f32 %v1694, %v2590
        %v2719 = vadd.f32 %v1695, %v2591
        %v2720 = vadd.f32 %v1696, %v2592
        %v2721 = vadd.f32 %v1697, %v2593
        %v2722 = vadd.f32 %v1698, %v2594
        %v2723 = vadd.f32 %v1699, %v2595
        %v2724 = vadd.f32 %v1700, %v2596
        %v2725 = vadd.f32 %v1701, %v2597
        %v2726 = vadd.f32 %v1702, %v2598
        %v2727 = vadd.f32 %v1703, %v2599
        %v2728 = vadd.f32 %v1704, %v2600
        %v2729 = vadd.f32 %v1705, %v2601
        %v2730 = vadd.f32 %v1706, %v2602
        %v2731 = vadd.f32 %v1707, %v2603
        %v2732 = vadd.f32 %v1708, %v2604
        %v2733 = vadd.f32 %v1709, %v2605
        %v2734 = vadd.f32 %v1710, %v2606
        %v2735 = vadd.f32 %v1711, %v2607
        %v2736 = vadd.f32 %v1712, %v2608
        %v2737 = vadd.f32 %v1713, %v2609
        %v2738 = vadd.f32 %v1714, %v2610
        %v2739 = vadd.f32 %v1715, %v2611
        %v2740 = vadd.f32 %v1716, %v2612
        %v2741 = vadd.f32 %v1717, %v2613
        %v2742 = vadd.f32 %v1718, %v2614
        %v2743 = vadd.f32 %v1719, %v2615
        %v2744 = vadd.f32 %v1720, %v2616
        %v2745 = vadd.f32 %v1721, %v2617
        %v2746 = vadd.f32 %v1722, %v2618
        %v2747 = vadd.f32 %v1723, %v2619
        %v2748 = vadd.f32 %v1724, %v2620
        %v2749 = vadd.f32 %v1725, %v2621
        %v2750 = vadd.f32 %v1726, %v2622
        %v2751 = vadd.f32 %v1727, %v2623
        %v2752 = vadd.f32 %v1728, %v2624
        %v2753 = vadd.f32 %v1729, %v2625
        %v2754 = vadd.f32 %v1730, %v2626
        %v2755 = vadd.f32 %v1731, %v2627
        %v2756 = vadd.f32 %v1732, %v2628
        %v2757 = vadd.f32 %v1733, %v2629
        %v2758 = vadd.f32 %v1734, %v2630
        %v2759 = vadd.f32 %v1735, %v2631
        %v2760 = vadd.f32 %v1736, %v2632
        %v2761 = vadd.f32 %v1737, %v2633
        %v2762 = vadd.f32 %v1738, %v2634
        %v2763 = vadd.f32 %v1739, %v2635
        %v2764 = vadd.f32 %v1740, %v2636
        %v2765 = vadd.f32 %v1741, %v2637
        %v2766 = vadd.f32 %v1742, %v2638
        %v2767 = vadd.f32 %v1743, %v2639
        %v2768 = vadd.f32 %v1744, %v2640
        %v2769 = vadd.f32 %v1745, %v2641
        %v2770 = vadd.f32 %v1746, %v2642
        %v2771 = vadd.f32 %v1747, %v2643
        %v2772 = vadd.f32 %v1748, %v2644
        %v2773 = vadd.f32 %v1749, %v2645
        %v2774 = vadd.f32 %v1750, %v2646
        %v2775 = vadd.f32 %v1751, %v2647
        %v2776 = vadd.f32 %v1752, %v2648
        %v2777 = vadd.f32 %v1753, %v2649
        %v2778 = vadd.f32 %v1754, %v2650
        %v2779 = vadd.f32 %v1755, %v2651
        %v2780 = vadd.f32 %v1756, %v2652
        %v2781 = vadd.f32 %v1757, %v2653
        %v2782 = vadd.f32 %v1758, %v2654
        %v2783 = vadd.f32 %v1759, %v2655
        %v2784 = vadd.f32 %v1760, %v2656
        %v2785 = vadd.f32 %v1761, %v2657
        %v2786 = vadd.f32 %v1762, %v2658
        %v2787 = vadd.f32 %v1763, %v2659
        %v2788 = vadd.f32 %v1764, %v2660
        %v2789 = vadd.f32 %v1765, %v2661
        %v2790 = vadd.f32 %v1766, %v2662
        %v2791 = vadd.f32 %v1767, %v2663
        %v2792 = vadd.f32 %v1768, %v2664
        %v2793 = vadd.f32 %v1769, %v2665
        %v2794 = vadd.f32 %v1770, %v2666
        %v2795 = vadd.f32 %v1771, %v2667
        %v2796 = vadd.f32 %v1772, %v2668
        %v2797 = vadd.f32 %v1773, %v2669
        %v2798 = vadd.f32 %v1774, %v2670
        %v2799 = vadd.f32 %v1775, %v2671
        %v2800 = vadd.f32 %v1776, %v2672
        %v2801 = vadd.f32 %v1777, %v2673
        %v2802 = vadd.f32 %v1778, %v2674
        %v2803 = vadd.f32 %v1779, %v2675
        %v2804 = vadd.f32 %v1780, %v2676
        %v2805 = vadd.f32 %v1781, %v2677
        %v2806 = vadd.f32 %v1782, %v2678
        %v2807 = vadd.f32 %v1783, %v2679
        %v2808 = vadd.f32 %v1784, %v2680
        %v2809 = vadd.f32 %v1785, %v2681
        %v2810 = vadd.f32 %v1786, %v2682
        %v2811 = vadd.f32 %v1787, %v2683
        %v2812 = vadd.f32 %v1788, %v2684
        %v2813 = vadd.f32 %v1789, %v2685
        %v2814 = vadd.f32 %v1790, %v2686
        %v2815 = vadd.f32 %v1791, %v2687
        %2816 = vst [vmem:[%s251] sm:$0xff] %v2688
        %2817 = vst [vmem:[%s251 + $0x8] sm:$0xff] %v2689
        %2818 = vst [vmem:[%s251 + $0x10] sm:$0xff] %v2690
        %2819 = vst [vmem:[%s251 + $0x18] sm:$0xff] %v2691
        %2820 = vst [vmem:[%s251 + $0x20] sm:$0xff] %v2692
        %2821 = vst [vmem:[%s251 + $0x28] sm:$0xff] %v2693
        %2822 = vst [vmem:[%s251 + $0x30] sm:$0xff] %v2694
        %2823 = vst [vmem:[%s251 + $0x38] sm:$0xff] %v2695
        %2824 = vst [vmem:[%s251 + $0x40] sm:$0xff] %v2696
        %2825 = vst [vmem:[%s251 + $0x48] sm:$0xff] %v2697
        %2826 = vst [vmem:[%s251 + $0x50] sm:$0xff] %v2698
        %2827 = vst [vmem:[%s251 + $0x58] sm:$0xff] %v2699
        %2828 = vst [vmem:[%s251 + $0x60] sm:$0xff] %v2700
        %2829 = vst [vmem:[%s251 + $0x68] sm:$0xff] %v2701
        %2830 = vst [vmem:[%s251 + $0x70] sm:$0xff] %v2702
        %2831 = vst [vmem:[%s251 + $0x78] sm:$0xff] %v2703
        %2832 = vst [vmem:[%s251 + $0x80] sm:$0xff] %v2704
        %2833 = vst [vmem:[%s251 + $0x88] sm:$0xff] %v2705
        %2834 = vst [vmem:[%s251 + $0x90] sm:$0xff] %v2706
        %2835 = vst [vmem:[%s251 + $0x98] sm:$0xff] %v2707
        %2836 = vst [vmem:[%s251 + $0xa0] sm:$0xff] %v2708
        %2837 = vst [vmem:[%s251 + $0xa8] sm:$0xff] %v2709
        %2838 = vst [vmem:[%s251 + $0xb0] sm:$0xff] %v2710
        %2839 = vst [vmem:[%s251 + $0xb8] sm:$0xff] %v2711
        %2840 = vst [vmem:[%s251 + $0xc0] sm:$0xff] %v2712
        %2841 = vst [vmem:[%s251 + $0xc8] sm:$0xff] %v2713
        %2842 = vst [vmem:[%s251 + $0xd0] sm:$0xff] %v2714
        %2843 = vst [vmem:[%s251 + $0xd8] sm:$0xff] %v2715
        %2844 = vst [vmem:[%s251 + $0xe0] sm:$0xff] %v2716
        %2845 = vst [vmem:[%s251 + $0xe8] sm:$0xff] %v2717
        %2846 = vst [vmem:[%s251 + $0xf0] sm:$0xff] %v2718
        %2847 = vst [vmem:[%s251 + $0xf8] sm:$0xff] %v2719
        %2848 = vst [vmem:[%s251 + $0x100] sm:$0xff] %v2720
        %2849 = vst [vmem:[%s251 + $0x108] sm:$0xff] %v2721
        %2850 = vst [vmem:[%s251 + $0x110] sm:$0xff] %v2722
        %2851 = vst [vmem:[%s251 + $0x118] sm:$0xff] %v2723
        %2852 = vst [vmem:[%s251 + $0x120] sm:$0xff] %v2724
        %2853 = vst [vmem:[%s251 + $0x128] sm:$0xff] %v2725
        %2854 = vst [vmem:[%s251 + $0x130] sm:$0xff] %v2726
        %2855 = vst [vmem:[%s251 + $0x138] sm:$0xff] %v2727
        %2856 = vst [vmem:[%s251 + $0x140] sm:$0xff] %v2728
        %2857 = vst [vmem:[%s251 + $0x148] sm:$0xff] %v2729
        %2858 = vst [vmem:[%s251 + $0x150] sm:$0xff] %v2730
        %2859 = vst [vmem:[%s251 + $0x158] sm:$0xff] %v2731
        %2860 = vst [vmem:[%s251 + $0x160] sm:$0xff] %v2732
        %2861 = vst [vmem:[%s251 + $0x168] sm:$0xff] %v2733
        %2862 = vst [vmem:[%s251 + $0x170] sm:$0xff] %v2734
        %2863 = vst [vmem:[%s251 + $0x178] sm:$0xff] %v2735
        %2864 = vst [vmem:[%s251 + $0x180] sm:$0xff] %v2736
        %2865 = vst [vmem:[%s251 + $0x188] sm:$0xff] %v2737
        %2866 = vst [vmem:[%s251 + $0x190] sm:$0xff] %v2738
        %2867 = vst [vmem:[%s251 + $0x198] sm:$0xff] %v2739
        %2868 = vst [vmem:[%s251 + $0x1a0] sm:$0xff] %v2740
        %2869 = vst [vmem:[%s251 + $0x1a8] sm:$0xff] %v2741
        %2870 = vst [vmem:[%s251 + $0x1b0] sm:$0xff] %v2742
        %2871 = vst [vmem:[%s251 + $0x1b8] sm:$0xff] %v2743
        %2872 = vst [vmem:[%s251 + $0x1c0] sm:$0xff] %v2744
        %2873 = vst [vmem:[%s251 + $0x1c8] sm:$0xff] %v2745
        %2874 = vst [vmem:[%s251 + $0x1d0] sm:$0xff] %v2746
        %2875 = vst [vmem:[%s251 + $0x1d8] sm:$0xff] %v2747
        %2876 = vst [vmem:[%s251 + $0x1e0] sm:$0xff] %v2748
        %2877 = vst [vmem:[%s251 + $0x1e8] sm:$0xff] %v2749
        %2878 = vst [vmem:[%s251 + $0x1f0] sm:$0xff] %v2750
        %2879 = vst [vmem:[%s251 + $0x1f8] sm:$0xff] %v2751
        %2880 = vst [vmem:[%s251 + $0x200] sm:$0xff] %v2752
        %2881 = vst [vmem:[%s251 + $0x208] sm:$0xff] %v2753
        %2882 = vst [vmem:[%s251 + $0x210] sm:$0xff] %v2754
        %2883 = vst [vmem:[%s251 + $0x218] sm:$0xff] %v2755
        %2884 = vst [vmem:[%s251 + $0x220] sm:$0xff] %v2756
        %2885 = vst [vmem:[%s251 + $0x228] sm:$0xff] %v2757
        %2886 = vst [vmem:[%s251 + $0x230] sm:$0xff] %v2758
        %2887 = vst [vmem:[%s251 + $0x238] sm:$0xff] %v2759
        %2888 = vst [vmem:[%s251 + $0x240] sm:$0xff] %v2760
        %2889 = vst [vmem:[%s251 + $0x248] sm:$0xff] %v2761
        %2890 = vst [vmem:[%s251 + $0x250] sm:$0xff] %v2762
        %2891 = vst [vmem:[%s251 + $0x258] sm:$0xff] %v2763
        %2892 = vst [vmem:[%s251 + $0x260] sm:$0xff] %v2764
        %2893 = vst [vmem:[%s251 + $0x268] sm:$0xff] %v2765
        %2894 = vst [vmem:[%s251 + $0x270] sm:$0xff] %v2766
        %2895 = vst [vmem:[%s251 + $0x278] sm:$0xff] %v2767
        %2896 = vst [vmem:[%s251 + $0x280] sm:$0xff] %v2768
        %2897 = vst [vmem:[%s251 + $0x288] sm:$0xff] %v2769
        %2898 = vst [vmem:[%s251 + $0x290] sm:$0xff] %v2770
        %2899 = vst [vmem:[%s251 + $0x298] sm:$0xff] %v2771
        %2900 = vst [vmem:[%s251 + $0x2a0] sm:$0xff] %v2772
        %2901 = vst [vmem:[%s251 + $0x2a8] sm:$0xff] %v2773
        %2902 = vst [vmem:[%s251 + $0x2b0] sm:$0xff] %v2774
        %2903 = vst [vmem:[%s251 + $0x2b8] sm:$0xff] %v2775
        %2904 = vst [vmem:[%s251 + $0x2c0] sm:$0xff] %v2776
        %2905 = vst [vmem:[%s251 + $0x2c8] sm:$0xff] %v2777
        %2906 = vst [vmem:[%s251 + $0x2d0] sm:$0xff] %v2778
        %2907 = vst [vmem:[%s251 + $0x2d8] sm:$0xff] %v2779
        %2908 = vst [vmem:[%s251 + $0x2e0] sm:$0xff] %v2780
        %2909 = vst [vmem:[%s251 + $0x2e8] sm:$0xff] %v2781
        %2910 = vst [vmem:[%s251 + $0x2f0] sm:$0xff] %v2782
        %2911 = vst [vmem:[%s251 + $0x2f8] sm:$0xff] %v2783
        %2912 = vst [vmem:[%s251 + $0x300] sm:$0xff] %v2784
        %2913 = vst [vmem:[%s251 + $0x308] sm:$0xff] %v2785
        %2914 = vst [vmem:[%s251 + $0x310] sm:$0xff] %v2786
        %2915 = vst [vmem:[%s251 + $0x318] sm:$0xff] %v2787
        %2916 = vst [vmem:[%s251 + $0x320] sm:$0xff] %v2788
        %2917 = vst [vmem:[%s251 + $0x328] sm:$0xff] %v2789
        %2918 = vst [vmem:[%s251 + $0x330] sm:$0xff] %v2790
        %2919 = vst [vmem:[%s251 + $0x338] sm:$0xff] %v2791
        %2920 = vst [vmem:[%s251 + $0x340] sm:$0xff] %v2792
        %2921 = vst [vmem:[%s251 + $0x348] sm:$0xff] %v2793
        %2922 = vst [vmem:[%s251 + $0x350] sm:$0xff] %v2794
        %2923 = vst [vmem:[%s251 + $0x358] sm:$0xff] %v2795
        %2924 = vst [vmem:[%s251 + $0x360] sm:$0xff] %v2796
        %2925 = vst [vmem:[%s251 + $0x368] sm:$0xff] %v2797
        %2926 = vst [vmem:[%s251 + $0x370] sm:$0xff] %v2798
        %2927 = vst [vmem:[%s251 + $0x378] sm:$0xff] %v2799
        %2928 = vst [vmem:[%s251 + $0x380] sm:$0xff] %v2800
        %2929 = vst [vmem:[%s251 + $0x388] sm:$0xff] %v2801
        %2930 = vst [vmem:[%s251 + $0x390] sm:$0xff] %v2802
        %2931 = vst [vmem:[%s251 + $0x398] sm:$0xff] %v2803
        %2932 = vst [vmem:[%s251 + $0x3a0] sm:$0xff] %v2804
        %2933 = vst [vmem:[%s251 + $0x3a8] sm:$0xff] %v2805
        %2934 = vst [vmem:[%s251 + $0x3b0] sm:$0xff] %v2806
        %2935 = vst [vmem:[%s251 + $0x3b8] sm:$0xff] %v2807
        %2936 = vst [vmem:[%s251 + $0x3c0] sm:$0xff] %v2808
        %2937 = vst [vmem:[%s251 + $0x3c8] sm:$0xff] %v2809
        %2938 = vst [vmem:[%s251 + $0x3d0] sm:$0xff] %v2810
        %2939 = vst [vmem:[%s251 + $0x3d8] sm:$0xff] %v2811
        %2940 = vst [vmem:[%s251 + $0x3e0] sm:$0xff] %v2812
        %2941 = vst [vmem:[%s251 + $0x3e8] sm:$0xff] %v2813
        %2942 = vst [vmem:[%s251 + $0x3f0] sm:$0xff] %v2814
        %2943 = vst [vmem:[%s251 + $0x3f8] sm:$0xff] %v2815
        %s2944 = sand.u32 %s123, 1
        %s2945 = scalar_lea.sflag [#allocation4], %s2944
        %s2946 = sand.u32 %s123, 1
        %s2947 = smul.addr %s2946, 1024
        %s2948 = scalar_lea.vmem [#allocation8], %s2947
        // Predicated region
        $region45: #{tpu_custom_call.1} parent=31 // pred_check
          %p2949 = pneg %p133
        $region46: #{tpu_custom_call.1} parent=31 // pred_check_branch
          %2951 = sbr.rel (%p2949) target = $region48
        $region47: #{tpu_custom_call.1} parent=31 // pred_region
          %s2952 = smul.u32 128, %s26
          %s2954 = ssub.s32 16384, 16384
          %2955 = vsyncadd %s2945, %s2954
          %s2956 = smul.addr %s25, 128
          %s2957 = sadd.s32 %s2952, %s2956
          %s2958 = smul.addr %s2957, 128
          %s2959 = scalar_lea.hbm %s3, %s2958
          %s2960 = sshll.u32 %s2948, 4
          %s2961 = int_to_ptr.vmem [resolvable:$true] %s2960
          %2966 = dma.vmem_to_hbm [thread:$0]  %s2961, 16384, %s2959, %s2945, 128, 128, 8
        $region48: #{tpu_custom_call.1} parent=31 // pred_fallthru
          _
      $region32: #{tpu_custom_call.1} parent=5 // pred_fallthru
        _
      %p2967 = scmp.le.s32.totalorder 2, %s16
      // Predicated region
      $region49: #{tpu_custom_call.1} parent=5 // pred_check
        %p2968 = pneg %p2967
      $region50: #{tpu_custom_call.1} parent=5 // pred_check_branch
        %2970 = sbr.rel (%p2968) target = $region52
      $region51: #{tpu_custom_call.1} parent=5 // pred_region
        %s2971 = ssub.s32 %s16, 2
        // Predicated region
        $region53: #{tpu_custom_call.1} parent=51 // pred_check
          %p2972 = pneg %p139
        $region54: #{tpu_custom_call.1} parent=51 // pred_check_branch
          %2974 = sbr.rel (%p2972) target = $region56
        $region55: #{tpu_custom_call.1} parent=51 // pred_region
          %s2975 = sand.u32 %s124, 1
          %s2976 = scalar_lea.sflag [#allocation4], %s2975
          %s2977 = sand.u32 %s124, 1
          %s2978 = smul.addr %s2977, 1024
          %s2979 = scalar_lea.vmem [#allocation8], %s2978
          %2980 = dma.done %s2976, 16384
        $region56: #{tpu_custom_call.1} parent=51 // pred_fallthru
          _
      $region52: #{tpu_custom_call.1} parent=5 // pred_fallthru
        _
    $region6: #{tpu_custom_call.1} parent=1 // loop_footer
      %s20 = sadd.s32 1, %s16
    $region7: #{tpu_custom_call.1} parent=1 // loop_footer_branch
      %15 = sbr.rel target = $region3
    $region8: #{tpu_custom_call.1} parent=1 // loop_exit
      _
    %2981 = vsyncpa [#allocation3], 1
    %s2982 = scalar_lea.sflag [#allocation3], 1
    %2983 = vsyncpa %s2982, 1
    %2984 = vsyncpa [#allocation6], 1
    %2985 = vsyncpa [#allocation4], 1
    %s2986 = scalar_lea.sflag [#allocation4], 1
    %2987 = vsyncpa %s2986, 1

</llo_original>
